<compile_context>
chip_gen: v6e
topology: v6e:2x2x1
jax: 0.10.0
libtpu: 0.0.40
codegen_flags: <defaults>
</compile_context>

<pallas_src>
import functools
import math

import numpy as np

import jax
import jax.numpy as jnp
from jax.experimental import pallas as pl
from jax.experimental.pallas import tpu as pltpu


# ----------------------------------------------------------------------------
# helpers (shared by kernel and pure-JAX reference)
# ----------------------------------------------------------------------------
def get_alibi_slopes(num_heads):
    """Matches get_alibi_slope(): 1/x^(i+1), x = 256^(1/H), rounded through bf16."""
    x = (2 ** 8) ** (1.0 / num_heads)
    s = np.array([1.0 / x ** (i + 1) for i in range(num_heads)], dtype=np.float32)
    s_bf16 = np.asarray(jnp.asarray(s).astype(jnp.bfloat16).astype(jnp.float32))
    return tuple(float(v) for v in s_bf16)


def _layernorm(x, w, b, eps=1e-5):
    mu = jnp.mean(x, axis=-1, keepdims=True)
    var = jnp.mean(jnp.square(x - mu), axis=-1, keepdims=True)
    return (x - mu) * jax.lax.rsqrt(var + eps) * w + b


def _gelu_tanh(x):  # gelu_pytorch_tanh
    return 0.5 * x * (1.0 + jnp.tanh(0.7978845608028654 * (x + 0.044715 * x * x * x)))


_NEG_BIG = -1e30  # finite "masked" logit (avoids -inf - -inf = NaN hazards)


# ----------------------------------------------------------------------------
# Pallas kernel: full Block forward for one batch element
# ----------------------------------------------------------------------------
def _block_kernel(*refs, n_head, head_dim, slopes, has_x0, has_v1):
    refs = list(refs)
    x_ref = refs.pop(0)
    x0_ref = refs.pop(0) if has_x0 else None
    lam_ref = refs.pop(0) if has_x0 else None
    v1_ref = refs.pop(0) if has_v1 else None
    (ln1w_ref, ln1b_ref, wqkv_ref, wproj3_ref,
     ln2w_ref, ln2b_ref, wg_ref, wu_ref, wd_ref, o_ref) = refs

    T = x_ref.shape[1]
    C = x_ref.shape[2]
    H, hd = n_head, head_dim

    # residual stream kept in f32
    x = x_ref[0].astype(jnp.float32)
    if has_x0:
        x = lam_ref[0] * x + lam_ref[1] * x0_ref[0].astype(jnp.float32)  # embed shortcut

    # ---------------- ln_1 + ALiBi causal attention ----------------
    h1 = _layernorm(x, ln1w_ref[...], ln1b_ref[...]).astype(jnp.bfloat16)
    qkv = jnp.dot(h1, wqkv_ref[...],
                  preferred_element_type=jnp.float32).astype(jnp.bfloat16)   # (T, 3C)

    v_flat = qkv[:, 2 * C:]                                                  # (T, C) bf16
    if has_v1:
        # value residual: lane-dense (T, C) mix before splitting into heads
        v_flat = (0.5 * v_flat + 0.5 * v1_ref[0]).astype(jnp.bfloat16)

    def to_heads(flat):  # (T, C) -> (H, T, hd) via static lane slices (no lane-split reshape)
        return jnp.stack([flat[:, i * hd:(i + 1) * hd] for i in range(H)], axis=0)

    q = to_heads(qkv[:, :C])
    k = to_heads(qkv[:, C:2 * C])
    v = to_heads(v_flat)

    # ALiBi bias folded with the causal mask, built once per grid step (f32).
    col = jax.lax.broadcasted_iota(jnp.int32, (T, T), 1)   # key index  (i)
    row = jax.lax.broadcasted_iota(jnp.int32, (T, T), 0)   # query index (j)
    causal = col <= row
    dist = jnp.maximum(col - row, 0).astype(jnp.float32)   # (i - j).clamp(min=0)
    bias = jnp.stack(
        [jnp.where(causal, dist * s, jnp.float32(_NEG_BIG)) for s in slopes],
        axis=0)                                            # (H, T, T) f32

    scale = 1.0 / math.sqrt(hd)
    # head-batched scores: single MXU op, contraction on the shared last dim (no k.T)
    att = jnp.einsum("hqd,hkd->hqk", q, k,
                     preferred_element_type=jnp.float32) * scale + bias      # (H, T, T)
    att = att - jnp.max(att, axis=-1, keepdims=True)
    p = jnp.exp(att)                                                         # unnormalized
    denom = jnp.sum(p, axis=-1, keepdims=True)                               # (H, T, 1)

    # head-batched p @ v, normalization deferred to after the matmul
    y = jnp.einsum("hqk,hkd->hqd", p.astype(jnp.bfloat16), v,
                   preferred_element_type=jnp.float32)                       # (H, T, hd)
    y = (y * pl.reciprocal(denom, approx=True)).astype(jnp.bfloat16)

    # output projection: per-head slab of w_proj, accumulated over heads
    yp = jnp.einsum("htd,hdc->htc", y, wproj3_ref[...],
                    preferred_element_type=jnp.float32)                      # (H, T, C)
    attn_out = jnp.sum(yp, axis=0).astype(jnp.bfloat16)                      # (T, C)
    x = x + attn_out.astype(jnp.float32)                                     # residual (f32)

    # ---------------- ln_2 + GEGLU MLP ----------------
    h2 = _layernorm(x, ln2w_ref[...], ln2b_ref[...]).astype(jnp.bfloat16)
    g = jnp.dot(h2, wg_ref[...], preferred_element_type=jnp.float32)
    u = jnp.dot(h2, wu_ref[...], preferred_element_type=jnp.float32).astype(jnp.bfloat16)
    mid = _gelu_tanh(g).astype(jnp.bfloat16) * u
    m = jnp.dot(mid, wd_ref[...], preferred_element_type=jnp.float32).astype(jnp.bfloat16)
    x = x + m.astype(jnp.float32)                                            # residual (f32)

    o_ref[0] = x.astype(o_ref.dtype)


# ----------------------------------------------------------------------------
# wrapper
# ----------------------------------------------------------------------------
def block_forward(x, params, *, n_head, x0=None, v1=None):
    B, T, C = x.shape
    hd = C // n_head
    slopes = get_alibi_slopes(n_head)
    has_x0 = x0 is not None
    has_v1 = v1 is not None

    kernel = functools.partial(_block_kernel, n_head=n_head, head_dim=hd,
                               slopes=slopes, has_x0=has_x0, has_v1=has_v1)

    def batch_spec():
        return pl.BlockSpec((1, T, C), lambda b: (b, 0, 0))

    def const_spec(shape):
        # Same block for every grid step -> DMA'd once by the pipeline.
        n = len(shape)
        return pl.BlockSpec(shape, lambda b: (0,) * n)

    # Only pass the inputs that actually exist (no zero-filled HBM traffic).
    args = [x]
    in_specs = [batch_spec()]
    if has_x0:
        args += [x0.astype(x.dtype), params["lambdas"].astype(jnp.float32)]
        in_specs += [batch_spec(),
                     pl.BlockSpec(memory_space=pltpu.MemorySpace.SMEM)]
    if has_v1:
        # (B, H, T, hd) -> lane-dense (B, T, C) so the in-kernel mix is full-width
        v1_flat = jnp.transpose(v1, (0, 2, 1, 3)).reshape(B, T, C).astype(jnp.bfloat16)
        args.append(v1_flat)
        in_specs.append(batch_spec())

    wproj3 = params["w_proj"].reshape(n_head, hd, C)   # per-head output-proj slabs
    weights = [params["ln1_w"], params["ln1_b"], params["w_qkv"], wproj3,
               params["ln2_w"], params["ln2_b"],
               params["w_gate"], params["w_up"], params["w_down"]]
    args += weights
    in_specs += [const_spec(tuple(int(s) for s in w.shape)) for w in weights]

    # advisory cost estimate for XLA scheduling
    flops_b = (2 * T * C * (3 * C)                 # qkv projection
               + 2 * 2 * n_head * T * T * hd       # q@k^T and p@v
               + 2 * T * C * C                     # output projection
               + 2 * 2 * T * C * (2 * C)           # gate + up
               + 2 * T * (2 * C) * C)              # down
    transc_b = n_head * T * T + T * (2 * C) + n_head * T
    bytes_acc = sum(int(np.prod(a.shape)) * a.dtype.itemsize for a in args)
    bytes_acc += B * T * C * x.dtype.itemsize      # output
    cost = pl.CostEstimate(flops=B * flops_b,
                           transcendentals=B * transc_b,
                           bytes_accessed=int(bytes_acc))

    return pl.pallas_call(
        kernel,
        out_shape=jax.ShapeDtypeStruct((B, T, C), x.dtype),
        grid=(B,),
        in_specs=in_specs,
        out_specs=pl.BlockSpec((1, T, C), lambda b: (b, 0, 0)),
        compiler_params=pltpu.CompilerParams(
            dimension_semantics=("parallel",),       # B>=2 -> both v7x TCs get work
            vmem_limit_bytes=64 * 1024 * 1024),
        cost_estimate=cost,
    )(*args)


# ----------------------------------------------------------------------------
# pure-JAX reference (mirrors the PyTorch Block forward)
# ----------------------------------------------------------------------------
def block_reference(x, params, *, n_head, x0=None, v1=None):
    B, T, C = x.shape
    hd = C // n_head
    slopes = jnp.asarray(get_alibi_slopes(n_head), jnp.float32)

    x = x.astype(jnp.float32)
    if x0 is not None:
        lam = params["lambdas"].astype(jnp.float32)
        x = lam[0] * x + lam[1] * x0.astype(jnp.float32)

    h = _layernorm(x, params["ln1_w"], params["ln1_b"]).astype(jnp.bfloat16)
    qkv = jnp.dot(h, params["w_qkv"],
                  preferred_element_type=jnp.float32).astype(jnp.bfloat16)
    q, k, v = jnp.split(qkv, 3, axis=-1)
    to_heads = lambda t: t.reshape(B, T, n_head, hd).transpose(0, 2, 1, 3)
    q, k, v = to_heads(q), to_heads(k), to_heads(v)
    if v1 is not None:
        v = (0.5 * v + 0.5 * v1.astype(jnp.bfloat16)).astype(jnp.bfloat16)

    scale = 1.0 / math.sqrt(hd)
    att = jnp.einsum("bhqd,bhkd->bhqk", q, k,
                     preferred_element_type=jnp.float32) * scale
    col = jnp.arange(T)[None, :]
    row = jnp.arange(T)[:, None]
    dist = jnp.maximum(col - row, 0).astype(jnp.float32)
    bias = jnp.where((col <= row)[None, None],
                     dist[None, None] * slopes[None, :, None, None],
                     jnp.float32(_NEG_BIG))
    att = att + bias
    att = att - jnp.max(att, axis=-1, keepdims=True)
    p = jnp.exp(att)
    p = (p / jnp.sum(p, axis=-1, keepdims=True)).astype(jnp.bfloat16)
    y = jnp.einsum("bhqk,bhkd->bhqd", p, v,
                   preferred_element_type=jnp.float32).astype(jnp.bfloat16)
    y = y.transpose(0, 2, 1, 3).reshape(B, T, C)
    y = jnp.dot(y, params["w_proj"],
                preferred_element_type=jnp.float32).astype(jnp.bfloat16)
    x = x + y.astype(jnp.float32)

    h2 = _layernorm(x, params["ln2_w"], params["ln2_b"]).astype(jnp.bfloat16)
    g = jnp.dot(h2, params["w_gate"], preferred_element_type=jnp.float32)
    u = jnp.dot(h2, params["w_up"],
                preferred_element_type=jnp.float32).astype(jnp.bfloat16)
    mid = _gelu_tanh(g).astype(jnp.bfloat16) * u
    m = jnp.dot(mid, params["w_down"],
                preferred_element_type=jnp.float32).astype(jnp.bfloat16)
    x = x + m.astype(jnp.float32)
    return x


# ----------------------------------------------------------------------------
# main
# ----------------------------------------------------------------------------
if __name__ == "__main__":
    B, T, C, H = 2, 8, 32, 4          # small GPTConfig-like shapes (head_dim = 8)
    hd = C // H

    key = jax.random.PRNGKey(0)
    ks = jax.random.split(key, 12)
    params = {
        # Block.__init__ shapes: lambdas (2,), LN (C,), linears as (in, out)
        "lambdas": jnp.array([0.8, 0.2], jnp.float32),
        "ln1_w": 1.0 + 0.1 * jax.random.normal(ks[0], (1, C), jnp.float32),
        "ln1_b": 0.1 * jax.random.normal(ks[1], (1, C), jnp.float32),
        "w_qkv": (0.08 * jax.random.normal(ks[2], (C, 3 * C), jnp.float32)).astype(jnp.bfloat16),
        "w_proj": (0.08 * jax.random.normal(ks[3], (C, C), jnp.float32)).astype(jnp.bfloat16),
        "ln2_w": 1.0 + 0.1 * jax.random.normal(ks[4], (1, C), jnp.float32),
        "ln2_b": 0.1 * jax.random.normal(ks[5], (1, C), jnp.float32),
        "w_gate": (0.08 * jax.random.normal(ks[6], (C, 2 * C), jnp.float32)).astype(jnp.bfloat16),
        "w_up": (0.08 * jax.random.normal(ks[7], (C, 2 * C), jnp.float32)).astype(jnp.bfloat16),
        "w_down": (0.08 * jax.random.normal(ks[8], (2 * C, C), jnp.float32)).astype(jnp.bfloat16),
    }

    x = jax.random.normal(ks[9], (B, T, C), jnp.float32)
    x0 = jax.random.normal(ks[10], (B, T, C), jnp.float32)
    v1 = (0.1 * jax.random.normal(ks[11], (B, H, T, hd), jnp.float32)).astype(jnp.bfloat16)

    # path 1: first layer (v1=None -> value residual is a no-op), embed shortcut on
    out1 = jax.block_until_ready(block_forward(x, params, n_head=H, x0=x0, v1=None))
    ref1 = block_reference(x, params, n_head=H, x0=x0, v1=None)
    np.testing.assert_allclose(np.asarray(out1), np.asarray(ref1), rtol=3e-2, atol=3e-2)

    # path 2: later layer with an explicit value-residual v1
    out2 = jax.block_until_ready(block_forward(x, params, n_head=H, x0=x0, v1=v1))
    ref2 = block_reference(x, params, n_head=H, x0=x0, v1=v1)
    np.testing.assert_allclose(np.asarray(out2), np.asarray(ref2), rtol=3e-2, atol=3e-2)

    # path 3: no embed shortcut, no v1 (minimal-input variant: x0/v1 not DMA'd at all)
    out3 = jax.block_until_ready(block_forward(x, params, n_head=H, x0=None, v1=None))
    ref3 = block_reference(x, params, n_head=H, x0=None, v1=None)
    np.testing.assert_allclose(np.asarray(out3), np.asarray(ref3), rtol=3e-2, atol=3e-2)

    print("KERNEL_OK")
</pallas_src>

<mosaic_0001>
module attributes {stable_mosaic.version = 11 : i64} {
  func.func @_block_kernel(%arg0: i32, %arg1: memref<1x8x32xf32, #tpu.memory_space<vmem>>, %arg2: memref<1x8x32xf32, #tpu.memory_space<vmem>>, %arg3: memref<2xf32, #tpu.memory_space<smem>>, %arg4: memref<1x32xf32, #tpu.memory_space<vmem>>, %arg5: memref<1x32xf32, #tpu.memory_space<vmem>>, %arg6: memref<32x96xbf16, #tpu.memory_space<vmem>>, %arg7: memref<4x8x32xbf16, #tpu.memory_space<vmem>>, %arg8: memref<1x32xf32, #tpu.memory_space<vmem>>, %arg9: memref<1x32xf32, #tpu.memory_space<vmem>>, %arg10: memref<32x64xbf16, #tpu.memory_space<vmem>>, %arg11: memref<32x64xbf16, #tpu.memory_space<vmem>>, %arg12: memref<64x32xbf16, #tpu.memory_space<vmem>>, %arg13: memref<1x8x32xf32, #tpu.memory_space<vmem>>) attributes {dimension_semantics = [#tpu.dimension_semantics<parallel>], iteration_bounds = array<i64: 2>, scalar_prefetch = 0 : i64, scratch_operands = 0 : i64, tpu.core_type = #tpu.core_type<tc>, window_params = [{transform_indices = @transform_0, window_bounds = array<i64: 1, 8, 32>}, {transform_indices = @transform_1, window_bounds = array<i64: 1, 8, 32>}, {transform_indices = @transform_2, window_bounds = array<i64: 2>}, {pipeline_mode = #tpu.pipeline_mode<synchronous>, transform_indices = @transform_3, window_bounds = array<i64: 1, 32>}, {pipeline_mode = #tpu.pipeline_mode<synchronous>, transform_indices = @transform_4, window_bounds = array<i64: 1, 32>}, {pipeline_mode = #tpu.pipeline_mode<synchronous>, transform_indices = @transform_5, window_bounds = array<i64: 32, 96>}, {pipeline_mode = #tpu.pipeline_mode<synchronous>, transform_indices = @transform_6, window_bounds = array<i64: 4, 8, 32>}, {pipeline_mode = #tpu.pipeline_mode<synchronous>, transform_indices = @transform_7, window_bounds = array<i64: 1, 32>}, {pipeline_mode = #tpu.pipeline_mode<synchronous>, transform_indices = @transform_8, window_bounds = array<i64: 1, 32>}, {pipeline_mode = #tpu.pipeline_mode<synchronous>, transform_indices = @transform_9, window_bounds = array<i64: 32, 64>}, {pipeline_mode = #tpu.pipeline_mode<synchronous>, transform_indices = @transform_10, window_bounds = array<i64: 32, 64>}, {pipeline_mode = #tpu.pipeline_mode<synchronous>, transform_indices = @transform_11, window_bounds = array<i64: 64, 32>}, {transform_indices = @transform_12, window_bounds = array<i64: 1, 8, 32>}]} {
    %c0 = arith.constant 0 : index
    %c0_0 = arith.constant 0 : index
    %c0_1 = arith.constant 0 : index
    %0 = vector.load %arg1[%c0, %c0_0, %c0_1] : memref<1x8x32xf32, #tpu.memory_space<vmem>>, vector<1x8x32xf32>
    %1 = vector.shape_cast %0 : vector<1x8x32xf32> to vector<8x32xf32>
    %c0_2 = arith.constant 0 : index
    %2 = memref.load %arg3[%c0_2] : memref<2xf32, #tpu.memory_space<smem>>
    %3 = vector.broadcast %2 : f32 to vector<8x32xf32>
    %4 = arith.mulf %3, %1 : vector<8x32xf32>
    %c1 = arith.constant 1 : index
    %5 = memref.load %arg3[%c1] : memref<2xf32, #tpu.memory_space<smem>>
    %c0_3 = arith.constant 0 : index
    %c0_4 = arith.constant 0 : index
    %c0_5 = arith.constant 0 : index
    %6 = vector.load %arg2[%c0_3, %c0_4, %c0_5] : memref<1x8x32xf32, #tpu.memory_space<vmem>>, vector<1x8x32xf32>
    %7 = vector.shape_cast %6 : vector<1x8x32xf32> to vector<8x32xf32>
    %8 = vector.broadcast %5 : f32 to vector<8x32xf32>
    %9 = arith.mulf %8, %7 : vector<8x32xf32>
    %10 = arith.addf %4, %9 : vector<8x32xf32>
    %c0_6 = arith.constant 0 : index
    %c0_7 = arith.constant 0 : index
    %11 = vector.load %arg4[%c0_6, %c0_7] : memref<1x32xf32, #tpu.memory_space<vmem>>, vector<1x32xf32>
    %c0_8 = arith.constant 0 : index
    %c0_9 = arith.constant 0 : index
    %12 = vector.load %arg5[%c0_8, %c0_9] : memref<1x32xf32, #tpu.memory_space<vmem>>, vector<1x32xf32>
    %cst = arith.constant dense<0.000000e+00> : vector<8xf32>
    %13 = vector.multi_reduction <add>, %10, %cst [1] : vector<8x32xf32> to vector<8xf32>
    %14 = vector.shape_cast %13 : vector<8xf32> to vector<8x1xf32>
    %cst_10 = arith.constant 3.200000e+01 : f32
    %15 = vector.broadcast %cst_10 : f32 to vector<8x1xf32>
    %16 = arith.divf %14, %15 : vector<8x1xf32>
    %17 = vector.broadcast %16 : vector<8x1xf32> to vector<8x32xf32>
    %18 = arith.subf %10, %17 : vector<8x32xf32>
    %19 = arith.mulf %18, %18 : vector<8x32xf32>
    %cst_11 = arith.constant dense<0.000000e+00> : vector<8xf32>
    %20 = vector.multi_reduction <add>, %19, %cst_11 [1] : vector<8x32xf32> to vector<8xf32>
    %21 = vector.shape_cast %20 : vector<8xf32> to vector<8x1xf32>
    %cst_12 = arith.constant 3.200000e+01 : f32
    %22 = vector.broadcast %cst_12 : f32 to vector<8x1xf32>
    %23 = arith.divf %21, %22 : vector<8x1xf32>
    %24 = vector.broadcast %16 : vector<8x1xf32> to vector<8x32xf32>
    %25 = arith.subf %10, %24 : vector<8x32xf32>
    %cst_13 = arith.constant 9.99999974E-6 : f32
    %26 = vector.broadcast %cst_13 : f32 to vector<8x1xf32>
    %27 = arith.addf %23, %26 : vector<8x1xf32>
    %28 = math.rsqrt %27 : vector<8x1xf32>
    %29 = vector.broadcast %28 : vector<8x1xf32> to vector<8x32xf32>
    %30 = arith.mulf %25, %29 : vector<8x32xf32>
    %31 = vector.broadcast %11 : vector<1x32xf32> to vector<8x32xf32>
    %32 = arith.mulf %30, %31 : vector<8x32xf32>
    %33 = vector.broadcast %12 : vector<1x32xf32> to vector<8x32xf32>
    %34 = arith.addf %32, %33 : vector<8x32xf32>
    %35 = arith.truncf %34 : vector<8x32xf32> to vector<8x32xbf16>
    %c0_14 = arith.constant 0 : index
    %c0_15 = arith.constant 0 : index
    %36 = vector.load %arg6[%c0_14, %c0_15] : memref<32x96xbf16, #tpu.memory_space<vmem>>, vector<32x96xbf16>
    %cst_16 = arith.constant dense<0.000000e+00> : vector<8x96xf32>
    %37 = tpu.matmul %35, %36, %cst_16 {dimension_numbers = #tpu.dot_dimension_numbers<[1], [0], [0], [1], [0, 0, 1, 1], [], []>} : vector<8x32xbf16>, vector<32x96xbf16>, vector<8x96xf32> -> vector<8x96xf32>
    %38 = arith.truncf %37 : vector<8x96xf32> to vector<8x96xbf16>
    %39 = vector.extract_strided_slice %38 {offsets = [0, 64], sizes = [8, 32], strides = [1, 1]} : vector<8x96xbf16> to vector<8x32xbf16>
    %40 = vector.extract_strided_slice %38 {offsets = [0, 0], sizes = [8, 32], strides = [1, 1]} : vector<8x96xbf16> to vector<8x32xbf16>
    %41 = vector.extract_strided_slice %40 {offsets = [0, 0], sizes = [8, 8], strides = [1, 1]} : vector<8x32xbf16> to vector<8x8xbf16>
    %42 = vector.extract_strided_slice %40 {offsets = [0, 8], sizes = [8, 8], strides = [1, 1]} : vector<8x32xbf16> to vector<8x8xbf16>
    %43 = vector.extract_strided_slice %40 {offsets = [0, 16], sizes = [8, 8], strides = [1, 1]} : vector<8x32xbf16> to vector<8x8xbf16>
    %44 = vector.extract_strided_slice %40 {offsets = [0, 24], sizes = [8, 8], strides = [1, 1]} : vector<8x32xbf16> to vector<8x8xbf16>
    %45 = vector.shape_cast %41 : vector<8x8xbf16> to vector<1x8x8xbf16>
    %46 = vector.shape_cast %42 : vector<8x8xbf16> to vector<1x8x8xbf16>
    %47 = vector.shape_cast %43 : vector<8x8xbf16> to vector<1x8x8xbf16>
    %48 = vector.shape_cast %44 : vector<8x8xbf16> to vector<1x8x8xbf16>
    %49 = tpu.concatenate %45, %46, %47, %48 in 0 : vector<1x8x8xbf16>, vector<1x8x8xbf16>, vector<1x8x8xbf16>, vector<1x8x8xbf16> -> vector<4x8x8xbf16>
    %50 = vector.extract_strided_slice %38 {offsets = [0, 32], sizes = [8, 32], strides = [1, 1]} : vector<8x96xbf16> to vector<8x32xbf16>
    %51 = vector.extract_strided_slice %50 {offsets = [0, 0], sizes = [8, 8], strides = [1, 1]} : vector<8x32xbf16> to vector<8x8xbf16>
    %52 = vector.extract_strided_slice %50 {offsets = [0, 8], sizes = [8, 8], strides = [1, 1]} : vector<8x32xbf16> to vector<8x8xbf16>
    %53 = vector.extract_strided_slice %50 {offsets = [0, 16], sizes = [8, 8], strides = [1, 1]} : vector<8x32xbf16> to vector<8x8xbf16>
    %54 = vector.extract_strided_slice %50 {offsets = [0, 24], sizes = [8, 8], strides = [1, 1]} : vector<8x32xbf16> to vector<8x8xbf16>
    %55 = vector.shape_cast %51 : vector<8x8xbf16> to vector<1x8x8xbf16>
    %56 = vector.shape_cast %52 : vector<8x8xbf16> to vector<1x8x8xbf16>
    %57 = vector.shape_cast %53 : vector<8x8xbf16> to vector<1x8x8xbf16>
    %58 = vector.shape_cast %54 : vector<8x8xbf16> to vector<1x8x8xbf16>
    %59 = tpu.concatenate %55, %56, %57, %58 in 0 : vector<1x8x8xbf16>, vector<1x8x8xbf16>, vector<1x8x8xbf16>, vector<1x8x8xbf16> -> vector<4x8x8xbf16>
    %60 = vector.extract_strided_slice %39 {offsets = [0, 0], sizes = [8, 8], strides = [1, 1]} : vector<8x32xbf16> to vector<8x8xbf16>
    %61 = vector.extract_strided_slice %39 {offsets = [0, 8], sizes = [8, 8], strides = [1, 1]} : vector<8x32xbf16> to vector<8x8xbf16>
    %62 = vector.extract_strided_slice %39 {offsets = [0, 16], sizes = [8, 8], strides = [1, 1]} : vector<8x32xbf16> to vector<8x8xbf16>
    %63 = vector.extract_strided_slice %39 {offsets = [0, 24], sizes = [8, 8], strides = [1, 1]} : vector<8x32xbf16> to vector<8x8xbf16>
    %64 = vector.shape_cast %60 : vector<8x8xbf16> to vector<1x8x8xbf16>
    %65 = vector.shape_cast %61 : vector<8x8xbf16> to vector<1x8x8xbf16>
    %66 = vector.shape_cast %62 : vector<8x8xbf16> to vector<1x8x8xbf16>
    %67 = vector.shape_cast %63 : vector<8x8xbf16> to vector<1x8x8xbf16>
    %68 = tpu.concatenate %64, %65, %66, %67 in 0 : vector<1x8x8xbf16>, vector<1x8x8xbf16>, vector<1x8x8xbf16>, vector<1x8x8xbf16> -> vector<4x8x8xbf16>
    %69 = tpu.iota {dimensions = array<i32: 1>} : vector<8x8xi32>
    %70 = tpu.iota {dimensions = array<i32: 0>} : vector<8x8xi32>
    %71 = arith.cmpi sle, %69, %70 : vector<8x8xi32>
    %72 = arith.subi %69, %70 : vector<8x8xi32>
    %c0_i32 = arith.constant 0 : i32
    %73 = vector.broadcast %c0_i32 : i32 to vector<8x8xi32>
    %74 = arith.maxsi %72, %73 : vector<8x8xi32>
    %75 = arith.sitofp %74 : vector<8x8xi32> to vector<8x8xf32>
    %cst_17 = arith.constant 2.500000e-01 : f32
    %76 = vector.broadcast %cst_17 : f32 to vector<8x8xf32>
    %77 = arith.mulf %75, %76 : vector<8x8xf32>
    %cst_18 = arith.constant -1.000000e+30 : f32
    %78 = vector.broadcast %cst_18 : f32 to vector<8x8xf32>
    %79 = arith.select %71, %77, %78 : vector<8x8xi1>, vector<8x8xf32>
    %cst_19 = arith.constant 6.250000e-02 : f32
    %80 = vector.broadcast %cst_19 : f32 to vector<8x8xf32>
    %81 = arith.mulf %75, %80 : vector<8x8xf32>
    %cst_20 = arith.constant -1.000000e+30 : f32
    %82 = vector.broadcast %cst_20 : f32 to vector<8x8xf32>
    %83 = arith.select %71, %81, %82 : vector<8x8xi1>, vector<8x8xf32>
    %cst_21 = arith.constant 1.562500e-02 : f32
    %84 = vector.broadcast %cst_21 : f32 to vector<8x8xf32>
    %85 = arith.mulf %75, %84 : vector<8x8xf32>
    %cst_22 = arith.constant -1.000000e+30 : f32
    %86 = vector.broadcast %cst_22 : f32 to vector<8x8xf32>
    %87 = arith.select %71, %85, %86 : vector<8x8xi1>, vector<8x8xf32>
    %cst_23 = arith.constant 3.906250e-03 : f32
    %88 = vector.broadcast %cst_23 : f32 to vector<8x8xf32>
    %89 = arith.mulf %75, %88 : vector<8x8xf32>
    %cst_24 = arith.constant -1.000000e+30 : f32
    %90 = vector.broadcast %cst_24 : f32 to vector<8x8xf32>
    %91 = arith.select %71, %89, %90 : vector<8x8xi1>, vector<8x8xf32>
    %92 = vector.shape_cast %79 : vector<8x8xf32> to vector<1x8x8xf32>
    %93 = vector.shape_cast %83 : vector<8x8xf32> to vector<1x8x8xf32>
    %94 = vector.shape_cast %87 : vector<8x8xf32> to vector<1x8x8xf32>
    %95 = vector.shape_cast %91 : vector<8x8xf32> to vector<1x8x8xf32>
    %96 = tpu.concatenate %92, %93, %94, %95 in 0 : vector<1x8x8xf32>, vector<1x8x8xf32>, vector<1x8x8xf32>, vector<1x8x8xf32> -> vector<4x8x8xf32>
    "tpu.trace_start"() <{level = 10 : i32, message = "hqd,hkd->hqk"}> : () -> ()
    %cst_25 = arith.constant dense<0.000000e+00> : vector<4x8x8xf32>
    %97 = tpu.matmul %49, %59, %cst_25 {dimension_numbers = #tpu.dot_dimension_numbers<[2], [2], [1], [1], [0, 0, 0, 1, 1, 1], [0], [0]>} : vector<4x8x8xbf16>, vector<4x8x8xbf16>, vector<4x8x8xf32> -> vector<4x8x8xf32>
    "tpu.trace_stop"() : () -> ()
    %cst_26 = arith.constant 0.353553385 : f32
    %98 = vector.broadcast %cst_26 : f32 to vector<4x8x8xf32>
    %99 = arith.mulf %97, %98 : vector<4x8x8xf32>
    %100 = arith.addf %99, %96 : vector<4x8x8xf32>
    %cst_27 = arith.constant dense<0xFF800000> : vector<4x8xf32>
    %101 = vector.multi_reduction <maximumf>, %100, %cst_27 [2] : vector<4x8x8xf32> to vector<4x8xf32>
    %102 = vector.shape_cast %101 : vector<4x8xf32> to vector<4x8x1xf32>
    %103 = vector.broadcast %102 : vector<4x8x1xf32> to vector<4x8x8xf32>
    %104 = arith.subf %100, %103 : vector<4x8x8xf32>
    %105 = math.exp %104 : vector<4x8x8xf32>
    %cst_28 = arith.constant dense<0.000000e+00> : vector<4x8xf32>
    %106 = vector.multi_reduction <add>, %105, %cst_28 [2] : vector<4x8x8xf32> to vector<4x8xf32>
    %107 = vector.shape_cast %106 : vector<4x8xf32> to vector<4x8x1xf32>
    %108 = arith.truncf %105 : vector<4x8x8xf32> to vector<4x8x8xbf16>
    "tpu.trace_start"() <{level = 10 : i32, message = "hqk,hkd->hqd"}> : () -> ()
    %cst_29 = arith.constant dense<0.000000e+00> : vector<4x8x8xf32>
    %109 = tpu.matmul %108, %68, %cst_29 {dimension_numbers = #tpu.dot_dimension_numbers<[2], [1], [1], [2], [0, 0, 0, 1, 1, 2], [0], [0]>} : vector<4x8x8xbf16>, vector<4x8x8xbf16>, vector<4x8x8xf32> -> vector<4x8x8xf32>
    "tpu.trace_stop"() : () -> ()
    %110 = tpu.reciprocal %107 {approx = true} : vector<4x8x1xf32> -> vector<4x8x1xf32>
    %111 = vector.broadcast %110 : vector<4x8x1xf32> to vector<4x8x8xf32>
    %112 = arith.mulf %109, %111 : vector<4x8x8xf32>
    %113 = arith.truncf %112 : vector<4x8x8xf32> to vector<4x8x8xbf16>
    %c0_30 = arith.constant 0 : index
    %c0_31 = arith.constant 0 : index
    %c0_32 = arith.constant 0 : index
    %114 = vector.load %arg7[%c0_30, %c0_31, %c0_32] : memref<4x8x32xbf16, #tpu.memory_space<vmem>>, vector<4x8x32xbf16>
    "tpu.trace_start"() <{level = 10 : i32, message = "htd,hdc->htc"}> : () -> ()
    %cst_33 = arith.constant dense<0.000000e+00> : vector<4x8x32xf32>
    %115 = tpu.matmul %113, %114, %cst_33 {dimension_numbers = #tpu.dot_dimension_numbers<[2], [1], [1], [2], [0, 0, 0, 1, 1, 2], [0], [0]>} : vector<4x8x8xbf16>, vector<4x8x32xbf16>, vector<4x8x32xf32> -> vector<4x8x32xf32>
    "tpu.trace_stop"() : () -> ()
    %cst_34 = arith.constant dense<0.000000e+00> : vector<8x32xf32>
    %116 = vector.multi_reduction <add>, %115, %cst_34 [0] : vector<4x8x32xf32> to vector<8x32xf32>
    %117 = arith.truncf %116 : vector<8x32xf32> to vector<8x32xbf16>
    %118 = arith.extf %117 : vector<8x32xbf16> to vector<8x32xf32>
    %119 = arith.addf %10, %118 : vector<8x32xf32>
    %c0_35 = arith.constant 0 : index
    %c0_36 = arith.constant 0 : index
    %120 = vector.load %arg8[%c0_35, %c0_36] : memref<1x32xf32, #tpu.memory_space<vmem>>, vector<1x32xf32>
    %c0_37 = arith.constant 0 : index
    %c0_38 = arith.constant 0 : index
    %121 = vector.load %arg9[%c0_37, %c0_38] : memref<1x32xf32, #tpu.memory_space<vmem>>, vector<1x32xf32>
    %cst_39 = arith.constant dense<0.000000e+00> : vector<8xf32>
    %122 = vector.multi_reduction <add>, %119, %cst_39 [1] : vector<8x32xf32> to vector<8xf32>
    %123 = vector.shape_cast %122 : vector<8xf32> to vector<8x1xf32>
    %cst_40 = arith.constant 3.200000e+01 : f32
    %124 = vector.broadcast %cst_40 : f32 to vector<8x1xf32>
    %125 = arith.divf %123, %124 : vector<8x1xf32>
    %126 = vector.broadcast %125 : vector<8x1xf32> to vector<8x32xf32>
    %127 = arith.subf %119, %126 : vector<8x32xf32>
    %128 = arith.mulf %127, %127 : vector<8x32xf32>
    %cst_41 = arith.constant dense<0.000000e+00> : vector<8xf32>
    %129 = vector.multi_reduction <add>, %128, %cst_41 [1] : vector<8x32xf32> to vector<8xf32>
    %130 = vector.shape_cast %129 : vector<8xf32> to vector<8x1xf32>
    %cst_42 = arith.constant 3.200000e+01 : f32
    %131 = vector.broadcast %cst_42 : f32 to vector<8x1xf32>
    %132 = arith.divf %130, %131 : vector<8x1xf32>
    %133 = vector.broadcast %125 : vector<8x1xf32> to vector<8x32xf32>
    %134 = arith.subf %119, %133 : vector<8x32xf32>
    %cst_43 = arith.constant 9.99999974E-6 : f32
    %135 = vector.broadcast %cst_43 : f32 to vector<8x1xf32>
    %136 = arith.addf %132, %135 : vector<8x1xf32>
    %137 = math.rsqrt %136 : vector<8x1xf32>
    %138 = vector.broadcast %137 : vector<8x1xf32> to vector<8x32xf32>
    %139 = arith.mulf %134, %138 : vector<8x32xf32>
    %140 = vector.broadcast %120 : vector<1x32xf32> to vector<8x32xf32>
    %141 = arith.mulf %139, %140 : vector<8x32xf32>
    %142 = vector.broadcast %121 : vector<1x32xf32> to vector<8x32xf32>
    %143 = arith.addf %141, %142 : vector<8x32xf32>
    %144 = arith.truncf %143 : vector<8x32xf32> to vector<8x32xbf16>
    %c0_44 = arith.constant 0 : index
    %c0_45 = arith.constant 0 : index
    %145 = vector.load %arg10[%c0_44, %c0_45] : memref<32x64xbf16, #tpu.memory_space<vmem>>, vector<32x64xbf16>
    %cst_46 = arith.constant dense<0.000000e+00> : vector<8x64xf32>
    %146 = tpu.matmul %144, %145, %cst_46 {dimension_numbers = #tpu.dot_dimension_numbers<[1], [0], [0], [1], [0, 0, 1, 1], [], []>} : vector<8x32xbf16>, vector<32x64xbf16>, vector<8x64xf32> -> vector<8x64xf32>
    %c0_47 = arith.constant 0 : index
    %c0_48 = arith.constant 0 : index
    %147 = vector.load %arg11[%c0_47, %c0_48] : memref<32x64xbf16, #tpu.memory_space<vmem>>, vector<32x64xbf16>
    %cst_49 = arith.constant dense<0.000000e+00> : vector<8x64xf32>
    %148 = tpu.matmul %144, %147, %cst_49 {dimension_numbers = #tpu.dot_dimension_numbers<[1], [0], [0], [1], [0, 0, 1, 1], [], []>} : vector<8x32xbf16>, vector<32x64xbf16>, vector<8x64xf32> -> vector<8x64xf32>
    %149 = arith.truncf %148 : vector<8x64xf32> to vector<8x64xbf16>
    %cst_50 = arith.constant 5.000000e-01 : f32
    %150 = vector.broadcast %cst_50 : f32 to vector<8x64xf32>
    %151 = arith.mulf %150, %146 : vector<8x64xf32>
    %cst_51 = arith.constant 4.471500e-02 : f32
    %152 = vector.broadcast %cst_51 : f32 to vector<8x64xf32>
    %153 = arith.mulf %152, %146 : vector<8x64xf32>
    %154 = arith.mulf %153, %146 : vector<8x64xf32>
    %155 = arith.mulf %154, %146 : vector<8x64xf32>
    %156 = arith.addf %146, %155 : vector<8x64xf32>
    %cst_52 = arith.constant 0.797884583 : f32
    %157 = vector.broadcast %cst_52 : f32 to vector<8x64xf32>
    %158 = arith.mulf %157, %156 : vector<8x64xf32>
    %159 = math.tanh %158 : vector<8x64xf32>
    %cst_53 = arith.constant 1.000000e+00 : f32
    %160 = vector.broadcast %cst_53 : f32 to vector<8x64xf32>
    %161 = arith.addf %160, %159 : vector<8x64xf32>
    %162 = arith.mulf %151, %161 : vector<8x64xf32>
    %163 = arith.truncf %162 : vector<8x64xf32> to vector<8x64xbf16>
    %164 = arith.mulf %163, %149 : vector<8x64xbf16>
    %c0_54 = arith.constant 0 : index
    %c0_55 = arith.constant 0 : index
    %165 = vector.load %arg12[%c0_54, %c0_55] : memref<64x32xbf16, #tpu.memory_space<vmem>>, vector<64x32xbf16>
    %cst_56 = arith.constant dense<0.000000e+00> : vector<8x32xf32>
    %166 = tpu.matmul %164, %165, %cst_56 {dimension_numbers = #tpu.dot_dimension_numbers<[1], [0], [0], [1], [0, 0, 1, 1], [], []>} : vector<8x64xbf16>, vector<64x32xbf16>, vector<8x32xf32> -> vector<8x32xf32>
    %167 = arith.truncf %166 : vector<8x32xf32> to vector<8x32xbf16>
    %168 = arith.extf %167 : vector<8x32xbf16> to vector<8x32xf32>
    %169 = arith.addf %119, %168 : vector<8x32xf32>
    %c0_57 = arith.constant 0 : index
    %c0_58 = arith.constant 0 : index
    %c0_59 = arith.constant 0 : index
    %170 = vector.load %arg13[%c0_57, %c0_58, %c0_59] : memref<1x8x32xf32, #tpu.memory_space<vmem>>, vector<1x8x32xf32>
    %171 = vector.shape_cast %170 : vector<1x8x32xf32> to vector<8x32xf32>
    %172 = vector.shape_cast %169 : vector<8x32xf32> to vector<1x8x32xf32>
    tpu.vector_store %arg13[%c0_57, %c0_58, %c0_59], %172 {strides = array<i32>} : memref<1x8x32xf32, #tpu.memory_space<vmem>>, vector<1x8x32xf32>,
    return
  }
  func.func @transform_0(%arg0: i32) -> (i32, i32, i32) {
    %c0_i32 = arith.constant 0 : i32
    %c0_i32_0 = arith.constant 0 : i32
    %c0_i32_1 = arith.constant 0 : i32
    return %arg0, %c0_i32, %c0_i32_0 : i32, i32, i32
  }
  func.func @transform_1(%arg0: i32) -> (i32, i32, i32) {
    %c0_i32 = arith.constant 0 : i32
    %c0_i32_0 = arith.constant 0 : i32
    %c0_i32_1 = arith.constant 0 : i32
    return %arg0, %c0_i32, %c0_i32_0 : i32, i32, i32
  }
  func.func @transform_2(%arg0: i32) -> i32 {
    %c0_i32 = arith.constant 0 : i32
    %c0_i32_0 = arith.constant 0 : i32
    return %c0_i32 : i32
  }
  func.func @transform_3(%arg0: i32) -> (i32, i32) {
    %c0_i32 = arith.constant 0 : i32
    %c0_i32_0 = arith.constant 0 : i32
    %c0_i32_1 = arith.constant 0 : i32
    return %c0_i32, %c0_i32_0 : i32, i32
  }
  func.func @transform_4(%arg0: i32) -> (i32, i32) {
    %c0_i32 = arith.constant 0 : i32
    %c0_i32_0 = arith.constant 0 : i32
    %c0_i32_1 = arith.constant 0 : i32
    return %c0_i32, %c0_i32_0 : i32, i32
  }
  func.func @transform_5(%arg0: i32) -> (i32, i32) {
    %c0_i32 = arith.constant 0 : i32
    %c0_i32_0 = arith.constant 0 : i32
    %c0_i32_1 = arith.constant 0 : i32
    return %c0_i32, %c0_i32_0 : i32, i32
  }
  func.func @transform_6(%arg0: i32) -> (i32, i32, i32) {
    %c0_i32 = arith.constant 0 : i32
    %c0_i32_0 = arith.constant 0 : i32
    %c0_i32_1 = arith.constant 0 : i32
    %c0_i32_2 = arith.constant 0 : i32
    return %c0_i32, %c0_i32_0, %c0_i32_1 : i32, i32, i32
  }
  func.func @transform_7(%arg0: i32) -> (i32, i32) {
    %c0_i32 = arith.constant 0 : i32
    %c0_i32_0 = arith.constant 0 : i32
    %c0_i32_1 = arith.constant 0 : i32
    return %c0_i32, %c0_i32_0 : i32, i32
  }
  func.func @transform_8(%arg0: i32) -> (i32, i32) {
    %c0_i32 = arith.constant 0 : i32
    %c0_i32_0 = arith.constant 0 : i32
    %c0_i32_1 = arith.constant 0 : i32
    return %c0_i32, %c0_i32_0 : i32, i32
  }
  func.func @transform_9(%arg0: i32) -> (i32, i32) {
    %c0_i32 = arith.constant 0 : i32
    %c0_i32_0 = arith.constant 0 : i32
    %c0_i32_1 = arith.constant 0 : i32
    return %c0_i32, %c0_i32_0 : i32, i32
  }
  func.func @transform_10(%arg0: i32) -> (i32, i32) {
    %c0_i32 = arith.constant 0 : i32
    %c0_i32_0 = arith.constant 0 : i32
    %c0_i32_1 = arith.constant 0 : i32
    return %c0_i32, %c0_i32_0 : i32, i32
  }
  func.func @transform_11(%arg0: i32) -> (i32, i32) {
    %c0_i32 = arith.constant 0 : i32
    %c0_i32_0 = arith.constant 0 : i32
    %c0_i32_1 = arith.constant 0 : i32
    return %c0_i32, %c0_i32_0 : i32, i32
  }
  func.func @transform_12(%arg0: i32) -> (i32, i32, i32) {
    %c0_i32 = arith.constant 0 : i32
    %c0_i32_0 = arith.constant 0 : i32
    %c0_i32_1 = arith.constant 0 : i32
    return %arg0, %c0_i32, %c0_i32_0 : i32, i32, i32
  }
}

</mosaic_0001>

<llo_original>
// kernel: tpu_custom_call.1
$region0: #{tpu_custom_call.1}
  #allocation0 [shape = 'u32[]', space=smem, size = 0x4, offset = 0x4, fixed_abs, tag = 'smem constant byte address 0x4 - core index']
  #allocation1 [shape = 'u32[144,128]{1,0:T(1,128)}', space=vmem, size = 0x12000, scoped, tag = 'internal scratch']
  %s0 = inlined_call_operand.vmem [shape: f32[2,8,32], index: 0, kind: input, shape index: {}]
  %s1 = inlined_call_operand.vmem [shape: f32[2,8,32], index: 1, kind: input, shape index: {}]
  %s2 = inlined_call_operand.vmem [shape: f32[2], index: 2, kind: input, shape index: {}]
  %s3 = inlined_call_operand.vmem [shape: f32[1,32], index: 3, kind: input, shape index: {}]
  %s4 = inlined_call_operand.vmem [shape: f32[1,32], index: 4, kind: input, shape index: {}]
  %s5 = inlined_call_operand.vmem [shape: bf16[32,96], index: 5, kind: input, shape index: {}]
  %s6 = inlined_call_operand.hbm [shape: bf16[4,8,32], index: 6, kind: input, shape index: {}]
  %s7 = inlined_call_operand.vmem [shape: f32[1,32], index: 7, kind: input, shape index: {}]
  %s8 = inlined_call_operand.hbm [shape: f32[1,32], index: 8, kind: input, shape index: {}]
  %s9 = inlined_call_operand.hbm [shape: bf16[32,64], index: 9, kind: input, shape index: {}]
  %s10 = inlined_call_operand.hbm [shape: bf16[32,64], index: 10, kind: input, shape index: {}]
  %s11 = inlined_call_operand.vmem [shape: bf16[64,32], index: 11, kind: input, shape index: {}]
  %s12 = inlined_call_operand.hbm [shape: f32[2,8,32], index: 12, kind: output, shape index: {}]
  %s13 = sld [smem:[#allocation0]]
  $region101: #{tpu_custom_call.1} parent=0
    _
  %s15 = ssub.s32 1, %s13
  %s16 = scalar_select 0, %s15, %s13
  $region1: #{tpu_custom_call.1} parent=0
    #allocation2 [shape = 'u8[512]{0}', space=smem, size = 0x200, scoped, tag = 'input window, operand 2, single buffered']
    #allocation3 [shape = 's32[2]{0}', space=sflag, size = 0x8, scoped, tag = 'scoped memory for tpu_custom_call.1']
    #allocation4 [shape = 's32[2]{0}', space=sflag, size = 0x8, scoped, tag = 'scoped memory for tpu_custom_call.1']
    #allocation5 [shape = 's32[2]{0}', space=sflag, size = 0x8, scoped, tag = 'scoped memory for tpu_custom_call.1']
    #allocation6 [shape = 'u8[8192]{0}', space=vmem, size = 0x2000, scoped, tag = 'input window, operand 6, single buffered']
    #allocation7 [shape = 'u8[512]{0}', space=vmem, size = 0x400, scoped, tag = 'input window, operand 8, single buffered']
    #allocation8 [shape = 's32[1]{0}', space=sflag, size = 0x4, scoped, tag = 'scoped memory for tpu_custom_call.1']
    #allocation9 [shape = 'u8[8192]{0}', space=vmem, size = 0x2000, scoped, tag = 'input window, operand 9, single buffered']
    #allocation10 [shape = 'u8[8192]{0}', space=vmem, size = 0x2000, scoped, tag = 'input window, operand 10, single buffered']
    #allocation11 [shape = 's32[1]{0}', space=sflag, size = 0x4, scoped, tag = 'scoped memory for tpu_custom_call.1']
    #allocation12 [shape = 'u8[8192]{0}', space=vmem, size = 0x2000, scoped, tag = 'output window, operand 0']
    %17 = vsyncpa [#allocation5], 0
    %18 = vsyncpa [#allocation3], 0
    %19 = vsyncpa [#allocation8], 0
    %20 = vsyncpa [#allocation11], 0
    %21 = vsyncpa [#allocation4], 0
    %s22 = scalar_lea.sflag [#allocation4], 1
    %23 = vsyncpa %s22, 0
    loop: start=0, step=1, limit=4
    $region2: #{tpu_custom_call.1} parent=1 // loop_pre_header
      _
    $region3: #{tpu_custom_call.1} parent=1 // loop_header
      %s25 = sphi 0, %s29
      %p26 = scmp.ge.s32.totalorder %s25, 4
      %s35 = sphi 0, %s37
      %s38 = sphi 0, %s35
      %s39 = sphi 0, %s38
      %s55 = sphi 0, %s39
      %s61 = sphi 0, %s63
      %s64 = sphi 0, %s61
      %s65 = sphi 0, %s64
      %s81 = sphi 0, %s65
      %s85 = sphi 0, %s85
      %s87 = sphi 0, %s85
      %s88 = sphi 0, %s87
      %s102 = sphi 0, %s88
      %s106 = sphi 0, %s106
      %s108 = sphi 0, %s106
      %s109 = sphi 0, %s108
      %s123 = sphi 0, %s109
      %s127 = sphi 0, %s127
      %s129 = sphi 0, %s127
      %s130 = sphi 0, %s129
      %s144 = sphi 0, %s130
      %s148 = sphi 0, %s148
      %s150 = sphi 0, %s148
      %s151 = sphi 0, %s150
      %s165 = sphi 0, %s151
      %s169 = sphi 0, %s169
      %s171 = sphi 0, %s169
      %s172 = sphi 0, %s171
      %s186 = sphi 0, %s172
      %s190 = sphi 0, %s190
      %s192 = sphi 0, %s190
      %s193 = sphi 0, %s192
      %s207 = sphi 0, %s193
      %s211 = sphi 0, %s211
      %s213 = sphi 0, %s211
      %s214 = sphi 0, %s213
      %s228 = sphi 0, %s214
      %s232 = sphi 0, %s232
      %s234 = sphi 0, %s232
      %s235 = sphi 0, %s234
      %s249 = sphi 0, %s235
      %s253 = sphi 0, %s253
      %s255 = sphi 0, %s253
      %s256 = sphi 0, %s255
      %s270 = sphi 0, %s256
      %s274 = sphi 0, %s274
      %s276 = sphi 0, %s274
      %s277 = sphi 0, %s276
      %s291 = sphi 0, %s277
      %s297 = sphi 0, %s299
      %s300 = sphi 0, %s297
      %s301 = sphi 0, %s300
      %s317 = sphi 0, %s301
    $region4: #{tpu_custom_call.1} parent=1 // loop_header_branch
      %28 = sbr.rel (%p26) target = $region8
    $region5: #{tpu_custom_call.1} parent=1 // loop_body
      %s30 = ssub.s32 %s25, 1
      %s31 = ssub.s32 %s25, 2
      %s32 = sadd.s32 %s25, 1
      %s33 = ssub.s32 %s25, %s32
      %p34 = scmp.eq.s32.totalorder %s33, 0
      %s36 = sadd.s32 %s35, 1
      %s37 = scalar_select %p34, %s35, %s36
      %p40 = pneg %p34
      %p41 = scmp.eq.s32.totalorder %s25, 1
      %p42 = por %p40, %p41
      %p43 = scmp.ne.s32.totalorder %s35, %s38
      %p44 = scmp.eq.s32.totalorder %s25, 0
      %p45 = por %p43, %p44
      %p46 = scmp.ne.s32.totalorder %s35, %s38
      %p47 = scmp.eq.s32.totalorder %s30, 1
      %p48 = por %p46, %p47
      %p49 = scmp.ne.s32.totalorder %s38, %s39
      %p50 = scmp.eq.s32.totalorder %s30, 0
      %p51 = por %p49, %p50
      %p52 = scmp.ne.s32.totalorder %s38, %s39
      %p53 = scmp.eq.s32.totalorder %s31, 1
      %p54 = por %p52, %p53
      %p56 = scmp.ne.s32.totalorder %s39, %s55
      %p57 = scmp.eq.s32.totalorder %s31, 0
      %p58 = por %p56, %p57
      %s59 = ssub.s32 %s25, %s32
      %p60 = scmp.eq.s32.totalorder %s59, 0
      %s62 = sadd.s32 %s61, 1
      %s63 = scalar_select %p60, %s61, %s62
      %p66 = pneg %p60
      %p67 = scmp.eq.s32.totalorder %s25, 1
      %p68 = por %p66, %p67
      %p69 = scmp.ne.s32.totalorder %s61, %s64
      %p70 = scmp.eq.s32.totalorder %s25, 0
      %p71 = por %p69, %p70
      %p72 = scmp.ne.s32.totalorder %s61, %s64
      %p73 = scmp.eq.s32.totalorder %s30, 1
      %p74 = por %p72, %p73
      %p75 = scmp.ne.s32.totalorder %s64, %s65
      %p76 = scmp.eq.s32.totalorder %s30, 0
      %p77 = por %p75, %p76
      %p78 = scmp.ne.s32.totalorder %s64, %s65
      %p79 = scmp.eq.s32.totalorder %s31, 1
      %p80 = por %p78, %p79
      %p82 = scmp.ne.s32.totalorder %s65, %s81
      %p83 = scmp.eq.s32.totalorder %s31, 0
      %p84 = por %p82, %p83
      %s86 = sadd.s32 %s85, 1
      %p89 = scmp.eq.s32.totalorder %s25, 1
      %p90 = scmp.ne.s32.totalorder %s85, %s87
      %p91 = scmp.eq.s32.totalorder %s25, 0
      %p92 = por %p90, %p91
      %p93 = scmp.ne.s32.totalorder %s85, %s87
      %p94 = scmp.eq.s32.totalorder %s30, 1
      %p95 = por %p93, %p94
      %p96 = scmp.ne.s32.totalorder %s87, %s88
      %p97 = scmp.eq.s32.totalorder %s30, 0
      %p98 = por %p96, %p97
      %p99 = scmp.ne.s32.totalorder %s87, %s88
      %p100 = scmp.eq.s32.totalorder %s31, 1
      %p101 = por %p99, %p100
      %p103 = scmp.ne.s32.totalorder %s88, %s102
      %p104 = scmp.eq.s32.totalorder %s31, 0
      %p105 = por %p103, %p104
      %s107 = sadd.s32 %s106, 1
      %p110 = scmp.eq.s32.totalorder %s25, 1
      %p111 = scmp.ne.s32.totalorder %s106, %s108
      %p112 = scmp.eq.s32.totalorder %s25, 0
      %p113 = por %p111, %p112
      %p114 = scmp.ne.s32.totalorder %s106, %s108
      %p115 = scmp.eq.s32.totalorder %s30, 1
      %p116 = por %p114, %p115
      %p117 = scmp.ne.s32.totalorder %s108, %s109
      %p118 = scmp.eq.s32.totalorder %s30, 0
      %p119 = por %p117, %p118
      %p120 = scmp.ne.s32.totalorder %s108, %s109
      %p121 = scmp.eq.s32.totalorder %s31, 1
      %p122 = por %p120, %p121
      %p124 = scmp.ne.s32.totalorder %s109, %s123
      %p125 = scmp.eq.s32.totalorder %s31, 0
      %p126 = por %p124, %p125
      %s128 = sadd.s32 %s127, 1
      %p131 = scmp.eq.s32.totalorder %s25, 1
      %p132 = scmp.ne.s32.totalorder %s127, %s129
      %p133 = scmp.eq.s32.totalorder %s25, 0
      %p134 = por %p132, %p133
      %p135 = scmp.ne.s32.totalorder %s127, %s129
      %p136 = scmp.eq.s32.totalorder %s30, 1
      %p137 = por %p135, %p136
      %p138 = scmp.ne.s32.totalorder %s129, %s130
      %p139 = scmp.eq.s32.totalorder %s30, 0
      %p140 = por %p138, %p139
      %p141 = scmp.ne.s32.totalorder %s129, %s130
      %p142 = scmp.eq.s32.totalorder %s31, 1
      %p143 = por %p141, %p142
      %p145 = scmp.ne.s32.totalorder %s130, %s144
      %p146 = scmp.eq.s32.totalorder %s31, 0
      %p147 = por %p145, %p146
      %s149 = sadd.s32 %s148, 1
      %p152 = scmp.eq.s32.totalorder %s25, 1
      %p153 = scmp.ne.s32.totalorder %s148, %s150
      %p154 = scmp.eq.s32.totalorder %s25, 0
      %p155 = por %p153, %p154
      %p156 = scmp.ne.s32.totalorder %s148, %s150
      %p157 = scmp.eq.s32.totalorder %s30, 1
      %p158 = por %p156, %p157
      %p159 = scmp.ne.s32.totalorder %s150, %s151
      %p160 = scmp.eq.s32.totalorder %s30, 0
      %p161 = por %p159, %p160
      %p162 = scmp.ne.s32.totalorder %s150, %s151
      %p163 = scmp.eq.s32.totalorder %s31, 1
      %p164 = por %p162, %p163
      %p166 = scmp.ne.s32.totalorder %s151, %s165
      %p167 = scmp.eq.s32.totalorder %s31, 0
      %p168 = por %p166, %p167
      %s170 = sadd.s32 %s169, 1
      %p173 = scmp.eq.s32.totalorder %s25, 1
      %p174 = scmp.ne.s32.totalorder %s169, %s171
      %p175 = scmp.eq.s32.totalorder %s25, 0
      %p176 = por %p174, %p175
      %p177 = scmp.ne.s32.totalorder %s169, %s171
      %p178 = scmp.eq.s32.totalorder %s30, 1
      %p179 = por %p177, %p178
      %p180 = scmp.ne.s32.totalorder %s171, %s172
      %p181 = scmp.eq.s32.totalorder %s30, 0
      %p182 = por %p180, %p181
      %p183 = scmp.ne.s32.totalorder %s171, %s172
      %p184 = scmp.eq.s32.totalorder %s31, 1
      %p185 = por %p183, %p184
      %p187 = scmp.ne.s32.totalorder %s172, %s186
      %p188 = scmp.eq.s32.totalorder %s31, 0
      %p189 = por %p187, %p188
      %s191 = sadd.s32 %s190, 1
      %p194 = scmp.eq.s32.totalorder %s25, 1
      %p195 = scmp.ne.s32.totalorder %s190, %s192
      %p196 = scmp.eq.s32.totalorder %s25, 0
      %p197 = por %p195, %p196
      %p198 = scmp.ne.s32.totalorder %s190, %s192
      %p199 = scmp.eq.s32.totalorder %s30, 1
      %p200 = por %p198, %p199
      %p201 = scmp.ne.s32.totalorder %s192, %s193
      %p202 = scmp.eq.s32.totalorder %s30, 0
      %p203 = por %p201, %p202
      %p204 = scmp.ne.s32.totalorder %s192, %s193
      %p205 = scmp.eq.s32.totalorder %s31, 1
      %p206 = por %p204, %p205
      %p208 = scmp.ne.s32.totalorder %s193, %s207
      %p209 = scmp.eq.s32.totalorder %s31, 0
      %p210 = por %p208, %p209
      %s212 = sadd.s32 %s211, 1
      %p215 = scmp.eq.s32.totalorder %s25, 1
      %p216 = scmp.ne.s32.totalorder %s211, %s213
      %p217 = scmp.eq.s32.totalorder %s25, 0
      %p218 = por %p216, %p217
      %p219 = scmp.ne.s32.totalorder %s211, %s213
      %p220 = scmp.eq.s32.totalorder %s30, 1
      %p221 = por %p219, %p220
      %p222 = scmp.ne.s32.totalorder %s213, %s214
      %p223 = scmp.eq.s32.totalorder %s30, 0
      %p224 = por %p222, %p223
      %p225 = scmp.ne.s32.totalorder %s213, %s214
      %p226 = scmp.eq.s32.totalorder %s31, 1
      %p227 = por %p225, %p226
      %p229 = scmp.ne.s32.totalorder %s214, %s228
      %p230 = scmp.eq.s32.totalorder %s31, 0
      %p231 = por %p229, %p230
      %s233 = sadd.s32 %s232, 1
      %p236 = scmp.eq.s32.totalorder %s25, 1
      %p237 = scmp.ne.s32.totalorder %s232, %s234
      %p238 = scmp.eq.s32.totalorder %s25, 0
      %p239 = por %p237, %p238
      %p240 = scmp.ne.s32.totalorder %s232, %s234
      %p241 = scmp.eq.s32.totalorder %s30, 1
      %p242 = por %p240, %p241
      %p243 = scmp.ne.s32.totalorder %s234, %s235
      %p244 = scmp.eq.s32.totalorder %s30, 0
      %p245 = por %p243, %p244
      %p246 = scmp.ne.s32.totalorder %s234, %s235
      %p247 = scmp.eq.s32.totalorder %s31, 1
      %p248 = por %p246, %p247
      %p250 = scmp.ne.s32.totalorder %s235, %s249
      %p251 = scmp.eq.s32.totalorder %s31, 0
      %p252 = por %p250, %p251
      %s254 = sadd.s32 %s253, 1
      %p257 = scmp.eq.s32.totalorder %s25, 1
      %p258 = scmp.ne.s32.totalorder %s253, %s255
      %p259 = scmp.eq.s32.totalorder %s25, 0
      %p260 = por %p258, %p259
      %p261 = scmp.ne.s32.totalorder %s253, %s255
      %p262 = scmp.eq.s32.totalorder %s30, 1
      %p263 = por %p261, %p262
      %p264 = scmp.ne.s32.totalorder %s255, %s256
      %p265 = scmp.eq.s32.totalorder %s30, 0
      %p266 = por %p264, %p265
      %p267 = scmp.ne.s32.totalorder %s255, %s256
      %p268 = scmp.eq.s32.totalorder %s31, 1
      %p269 = por %p267, %p268
      %p271 = scmp.ne.s32.totalorder %s256, %s270
      %p272 = scmp.eq.s32.totalorder %s31, 0
      %p273 = por %p271, %p272
      %s275 = sadd.s32 %s274, 1
      %p278 = scmp.eq.s32.totalorder %s25, 1
      %p279 = scmp.ne.s32.totalorder %s274, %s276
      %p280 = scmp.eq.s32.totalorder %s25, 0
      %p281 = por %p279, %p280
      %p282 = scmp.ne.s32.totalorder %s274, %s276
      %p283 = scmp.eq.s32.totalorder %s30, 1
      %p284 = por %p282, %p283
      %p285 = scmp.ne.s32.totalorder %s276, %s277
      %p286 = scmp.eq.s32.totalorder %s30, 0
      %p287 = por %p285, %p286
      %p288 = scmp.ne.s32.totalorder %s276, %s277
      %p289 = scmp.eq.s32.totalorder %s31, 1
      %p290 = por %p288, %p289
      %p292 = scmp.ne.s32.totalorder %s277, %s291
      %p293 = scmp.eq.s32.totalorder %s31, 0
      %p294 = por %p292, %p293
      %s295 = ssub.s32 %s25, %s32
      %p296 = scmp.eq.s32.totalorder %s295, 0
      %s298 = sadd.s32 %s297, 1
      %s299 = scalar_select %p296, %s297, %s298
      %p302 = pneg %p296
      %p303 = scmp.eq.s32.totalorder %s25, 1
      %p304 = por %p302, %p303
      %p305 = scmp.ne.s32.totalorder %s297, %s300
      %p306 = scmp.eq.s32.totalorder %s25, 0
      %p307 = por %p305, %p306
      %p308 = scmp.ne.s32.totalorder %s297, %s300
      %p309 = scmp.eq.s32.totalorder %s30, 1
      %p310 = por %p308, %p309
      %p311 = scmp.ne.s32.totalorder %s300, %s301
      %p312 = scmp.eq.s32.totalorder %s30, 0
      %p313 = por %p311, %p312
      %p314 = scmp.ne.s32.totalorder %s300, %s301
      %p315 = scmp.eq.s32.totalorder %s31, 1
      %p316 = por %p314, %p315
      %p318 = scmp.ne.s32.totalorder %s301, %s317
      %p319 = scmp.eq.s32.totalorder %s31, 0
      %p320 = por %p318, %p319
      %p321 = scmp.le.s32.totalorder 1, %s25
      %p322 = scmp.lt.s32.totalorder %s25, 3
      %p323 = pnand %p321, %p322
      %p324 = pneg %p323
      // Predicated region
      $region9: #{tpu_custom_call.1} parent=5 // pred_check
        _
      $region10: #{tpu_custom_call.1} parent=5 // pred_check_branch
        %326 = sbr.rel (%p323) target = $region12
      $region11: #{tpu_custom_call.1} parent=5 // pred_region
        %s327 = ssub.s32 %s25, 1
        // Predicated region
        $region13: #{tpu_custom_call.1} parent=11 // pred_check
          %p328 = pneg %p98
        $region14: #{tpu_custom_call.1} parent=11 // pred_check_branch
          %330 = sbr.rel (%p328) target = $region16
        $region15: #{tpu_custom_call.1} parent=11 // pred_region
          %s332 = ssub.s32 16, 16
          %333 = vsyncadd [#allocation5], %s332
          %s335 = sshll.u32 %s2, 4
          %s336 = int_to_ptr.vmem [resolvable:$true] %s335
          %338 = dma.vmem_to_smem %s336, 16, [#allocation2], [#allocation5]
        $region16: #{tpu_custom_call.1} parent=11 // pred_fallthru
          _
        // Predicated region
        $region17: #{tpu_custom_call.1} parent=11 // pred_check
          %p339 = pneg %p119
        $region18: #{tpu_custom_call.1} parent=11 // pred_check_branch
          %341 = sbr.rel (%p339) target = $region20
        $region19: #{tpu_custom_call.1} parent=11 // pred_region
          _
        $region20: #{tpu_custom_call.1} parent=11 // pred_fallthru
          _
        // Predicated region
        $region21: #{tpu_custom_call.1} parent=11 // pred_check
          %p342 = pneg %p140
        $region22: #{tpu_custom_call.1} parent=11 // pred_check_branch
          %344 = sbr.rel (%p342) target = $region24
        $region23: #{tpu_custom_call.1} parent=11 // pred_region
          _
        $region24: #{tpu_custom_call.1} parent=11 // pred_fallthru
          _
        // Predicated region
        $region25: #{tpu_custom_call.1} parent=11 // pred_check
          %p345 = pneg %p161
        $region26: #{tpu_custom_call.1} parent=11 // pred_check_branch
          %347 = sbr.rel (%p345) target = $region28
        $region27: #{tpu_custom_call.1} parent=11 // pred_region
          _
        $region28: #{tpu_custom_call.1} parent=11 // pred_fallthru
          _
        // Predicated region
        $region29: #{tpu_custom_call.1} parent=11 // pred_check
          %p348 = pneg %p182
        $region30: #{tpu_custom_call.1} parent=11 // pred_check_branch
          %350 = sbr.rel (%p348) target = $region32
        $region31: #{tpu_custom_call.1} parent=11 // pred_region
          %s352 = ssub.s32 256, 256
          %353 = vsyncadd [#allocation3], %s352
          %s354 = sshll.u32 [#allocation6], 4
          %s355 = int_to_ptr.vmem [resolvable:$true] %s354
          %360 = dma.hbm_to_vmem [thread:$0]  %s6, 256, %s355, [#allocation3], 64, 64, 4
        $region32: #{tpu_custom_call.1} parent=11 // pred_fallthru
          _
        // Predicated region
        $region33: #{tpu_custom_call.1} parent=11 // pred_check
          %p361 = pneg %p203
        $region34: #{tpu_custom_call.1} parent=11 // pred_check_branch
          %363 = sbr.rel (%p361) target = $region36
        $region35: #{tpu_custom_call.1} parent=11 // pred_region
          _
        $region36: #{tpu_custom_call.1} parent=11 // pred_fallthru
          _
        // Predicated region
        $region37: #{tpu_custom_call.1} parent=11 // pred_check
          %p364 = pneg %p224
        $region38: #{tpu_custom_call.1} parent=11 // pred_check_branch
          %366 = sbr.rel (%p364) target = $region40
        $region39: #{tpu_custom_call.1} parent=11 // pred_region
          %s368 = ssub.s32 16, 16
          %369 = vsyncadd [#allocation8], %s368
          %s371 = sshll.u32 [#allocation7], 4
          %s372 = int_to_ptr.vmem [resolvable:$true] %s371
          %374 = dma.hbm_to_vmem [thread:$0]  %s8, 16, %s372, [#allocation8]
        $region40: #{tpu_custom_call.1} parent=11 // pred_fallthru
          _
        // Predicated region
        $region41: #{tpu_custom_call.1} parent=11 // pred_check
          %p375 = pneg %p245
        $region42: #{tpu_custom_call.1} parent=11 // pred_check_branch
          %377 = sbr.rel (%p375) target = $region44
        $region43: #{tpu_custom_call.1} parent=11 // pred_region
          %s379 = ssub.s32 256, 256
          %380 = vsyncadd [#allocation8], %s379
          %s381 = sshll.u32 [#allocation9], 4
          %s382 = int_to_ptr.vmem [resolvable:$true] %s381
          %387 = dma.hbm_to_vmem [thread:$0]  %s9, 256, %s382, [#allocation8], 64, 64, 4
        $region44: #{tpu_custom_call.1} parent=11 // pred_fallthru
          _
        // Predicated region
        $region45: #{tpu_custom_call.1} parent=11 // pred_check
          %p388 = pneg %p266
        $region46: #{tpu_custom_call.1} parent=11 // pred_check_branch
          %390 = sbr.rel (%p388) target = $region48
        $region47: #{tpu_custom_call.1} parent=11 // pred_region
          %s392 = ssub.s32 256, 256
          %393 = vsyncadd [#allocation11], %s392
          %s394 = sshll.u32 [#allocation10], 4
          %s395 = int_to_ptr.vmem [resolvable:$true] %s394
          %400 = dma.hbm_to_vmem [thread:$0]  %s10, 256, %s395, [#allocation11], 64, 64, 4
        $region48: #{tpu_custom_call.1} parent=11 // pred_fallthru
          _
        // Predicated region
        $region49: #{tpu_custom_call.1} parent=11 // pred_check
          %p401 = pneg %p287
        $region50: #{tpu_custom_call.1} parent=11 // pred_check_branch
          %403 = sbr.rel (%p401) target = $region52
        $region51: #{tpu_custom_call.1} parent=11 // pred_region
          _
        $region52: #{tpu_custom_call.1} parent=11 // pred_fallthru
          _
      $region12: #{tpu_custom_call.1} parent=5 // pred_fallthru
        _
      %p404 = scmp.lt.s32.totalorder %s25, 2
      // Predicated region
      $region53: #{tpu_custom_call.1} parent=5 // pred_check
        %p405 = pneg %p404
      $region54: #{tpu_custom_call.1} parent=5 // pred_check_branch
        %407 = sbr.rel (%p405) target = $region56
      $region55: #{tpu_custom_call.1} parent=5 // pred_region
        // Predicated region
        $region57: #{tpu_custom_call.1} parent=55 // pred_check
          %p408 = pneg %p45
        $region58: #{tpu_custom_call.1} parent=55 // pred_check_branch
          %410 = sbr.rel (%p408) target = $region60
        $region59: #{tpu_custom_call.1} parent=55 // pred_region
          %p411 = scmp.lt.s32.totalorder %s25, 1
          %s412 = scalar_select %p411, %s25, 1
          %s413 = smul.addr %s412, 8
          %s414 = scalar_lea.vmem %s0, %s413
        $region60: #{tpu_custom_call.1} parent=55 // pred_fallthru
          _
        // Predicated region
        $region61: #{tpu_custom_call.1} parent=55 // pred_check
          %p415 = pneg %p71
        $region62: #{tpu_custom_call.1} parent=55 // pred_check_branch
          %417 = sbr.rel (%p415) target = $region64
        $region63: #{tpu_custom_call.1} parent=55 // pred_region
          %p418 = scmp.lt.s32.totalorder %s25, 1
          %s419 = scalar_select %p418, %s25, 1
          %s420 = smul.addr %s419, 8
          %s421 = scalar_lea.vmem %s1, %s420
        $region64: #{tpu_custom_call.1} parent=55 // pred_fallthru
          _
      $region56: #{tpu_custom_call.1} parent=5 // pred_fallthru
        _
      %p422 = scmp.le.s32.totalorder 1, %s25
      %p423 = scmp.lt.s32.totalorder %s25, 3
      %p424 = pnand %p422, %p423
      %p425 = pneg %p424
      // Predicated region
      $region65: #{tpu_custom_call.1} parent=5 // pred_check
        _
      $region66: #{tpu_custom_call.1} parent=5 // pred_check_branch
        %427 = sbr.rel (%p424) target = $region68
      $region67: #{tpu_custom_call.1} parent=5 // pred_region
        %s428 = ssub.s32 %s25, 1
        // Predicated region
        $region69: #{tpu_custom_call.1} parent=67 // pred_check
          %p429 = pneg %p98
        $region70: #{tpu_custom_call.1} parent=67 // pred_check_branch
          %431 = sbr.rel (%p429) target = $region72
        $region71: #{tpu_custom_call.1} parent=67 // pred_region
          %432 = dma.done [#allocation5], 16
        $region72: #{tpu_custom_call.1} parent=67 // pred_fallthru
          _
        // Predicated region
        $region73: #{tpu_custom_call.1} parent=67 // pred_check
          %p433 = pneg %p182
        $region74: #{tpu_custom_call.1} parent=67 // pred_check_branch
          %435 = sbr.rel (%p433) target = $region76
        $region75: #{tpu_custom_call.1} parent=67 // pred_region
          %436 = dma.done [#allocation3], 256
        $region76: #{tpu_custom_call.1} parent=67 // pred_fallthru
          _
        // Predicated region
        $region77: #{tpu_custom_call.1} parent=67 // pred_check
          %p437 = pneg %p224
        $region78: #{tpu_custom_call.1} parent=67 // pred_check_branch
          %439 = sbr.rel (%p437) target = $region80
        $region79: #{tpu_custom_call.1} parent=67 // pred_region
          %440 = dma.done [#allocation8], 16
        $region80: #{tpu_custom_call.1} parent=67 // pred_fallthru
          _
        // Predicated region
        $region81: #{tpu_custom_call.1} parent=67 // pred_check
          %p441 = pneg %p245
        $region82: #{tpu_custom_call.1} parent=67 // pred_check_branch
          %443 = sbr.rel (%p441) target = $region84
        $region83: #{tpu_custom_call.1} parent=67 // pred_region
          %444 = dma.done [#allocation8], 256
        $region84: #{tpu_custom_call.1} parent=67 // pred_fallthru
          _
        // Predicated region
        $region85: #{tpu_custom_call.1} parent=67 // pred_check
          %p445 = pneg %p266
        $region86: #{tpu_custom_call.1} parent=67 // pred_check_branch
          %447 = sbr.rel (%p445) target = $region88
        $region87: #{tpu_custom_call.1} parent=67 // pred_region
          %448 = dma.done [#allocation11], 256
        $region88: #{tpu_custom_call.1} parent=67 // pred_fallthru
          _
        %449 = sfence
        %p450 = scmp.lt.s32.totalorder %s30, 1
        %s451 = scalar_select %p450, %s30, 1
        %s452 = smul.addr %s451, 8
        %s453 = scalar_lea.vmem %s0, %s452
        %p454 = pneg %p51
        %p455 = pneg %p48
        %p456 = scmp.lt.s32.totalorder %s30, 1
        %s457 = scalar_select %p456, %s30, 1
        %s458 = smul.addr %s457, 8
        %s459 = scalar_lea.vmem %s1, %s458
        %p460 = pneg %p77
        %p461 = pneg %p74
        %p462 = pneg %p98
        %p463 = pneg %p95
        %p464 = pneg %p119
        %p465 = pneg %p116
        %p466 = pneg %p140
        %p467 = pneg %p137
        %p468 = pneg %p161
        %p469 = pneg %p158
        %p470 = pneg %p182
        %p471 = pneg %p179
        %p472 = pneg %p203
        %p473 = pneg %p200
        %p474 = pneg %p224
        %p475 = pneg %p221
        %p476 = pneg %p245
        %p477 = pneg %p242
        %p478 = pneg %p266
        %p479 = pneg %p263
        %p480 = pneg %p287
        %p481 = pneg %p284
        %p482 = pneg %p313
        %p483 = pneg %p310
        %s484 = sand.u32 %s300, 1
        %s485 = scalar_lea.sflag [#allocation4], %s484
        %s486 = sand.u32 %s300, 1
        %s487 = smul.addr %s486, 8
        %s488 = scalar_lea.vmem [#allocation12], %s487
        %p489 = scmp.lt.s32.totalorder %s30, 1
        %s490 = scalar_select %p489, %s30, 1
        %s491 = smul.addr %s490, 8
        %s492 = scalar_lea.vmem %s0, %s491
        %p493 = scmp.lt.s32.totalorder %s30, 1
        %s494 = scalar_select %p493, %s30, 1
        %s495 = smul.addr %s494, 8
        %s496 = scalar_lea.vmem %s1, %s495
        %v498 = vld [vmem:[%s492] sm:$0xff]
        %s499 = sld [smem:[#allocation2]]
        %v500 = vstv %s499
        %v501 = vmul.f32 %v500, %v498
        %s502 = sld [smem:[#allocation2 + $0x1]]
        %v503 = vld [vmem:[%s496] sm:$0xff]
        %v504 = vstv %s502
        %v505 = vmul.f32 %v504, %v503
        %v506 = vadd.f32 %v501, %v505
        %v507 = vld [vmem:[%s3] sm:$0x1]
        %v508 = vld [vmem:[%s4] sm:$0x1]
        %vm509 = vcmask 261120
        %v510 = vsel %vm509, %v506, 0.0
        %511 = vadd.xlane.f32.xlu0 %v510
        %v512 = vpop.xlane.xlu0 %511
        %v513 = vrcp.pop 32.0
        %v514 = vmul.f32 %v512, %v513
        %v515 = vsub.f32 %v506, %v514
        %v516 = vmul.f32 %v515, %v515
        %v517 = vsel %vm509, %v516, 0.0
        %518 = vadd.xlane.f32.xlu0 %v517
        %v519 = vpop.xlane.xlu0 %518
        %v520 = vmul.f32 %v519, %v513
        %v521 = vadd.f32 %v520, 1e-05
        %v522 = vrsqrt.pop %v521
        %v523 = vmul.f32 %v515, %v522
        %v525 = vlaneseq
        %v526 = vshrl.u32 %v525, 7
        %v527 = vsub.s32 0, %v526
        %v528 = vrot.slane %v507, %v527
        %v530 = vmul.f32 %v523, %v528
        %v532 = vlaneseq
        %v533 = vshrl.u32 %v532, 7
        %v534 = vsub.s32 0, %v533
        %v535 = vrot.slane %v508, %v534
        %v537 = vadd.f32 %v530, %v535
        %v538 = vpack.c.bf16 %v537, %v537
        %v539 = vld [vmem:[%s5] sm:$0xf]
        %v540 = vld [vmem:[%s5 + $0x4] sm:$0xf]
        %v541 = vld [vmem:[%s5 + $0x8] sm:$0xf]
        %v542 = vld [vmem:[%s5 + $0xc] sm:$0xf]
        %v547 = vunpack.c.l.b16 %v539
        %v548 = vunpack.c.l.b16 %v540
        %v549 = vunpack.c.l.b16 %v541
        %v550 = vunpack.c.l.b16 %v542
        %v551 = vpack.c.b16 %v548, %v547
        %v552 = vpack.c.b16 %v550, %v549
        %v556 = vsel %vm509, %v538, 0
        %558 = vmatprep.subr.bf16.mxu0 0
        %559 = vmatpush1.bf16.msra.mxu0 0
        %560 = vmatprep.subr.bf16.mxu0 0
        %561 = vmatpush1.bf16.msra.mxu0 0
        %562 = vmatprep.subr.bf16.mxu0 0
        %563 = vmatpush1.bf16.msra.mxu0 0
        %564 = vmatprep.subr.bf16.mxu0 0
        %565 = vmatpush1.bf16.msra.mxu0 0
        %566 = vmatprep.subr.bf16.mxu0 0
        %567 = vmatpush1.bf16.msra.mxu0 0
        %568 = vmatprep.subr.bf16.mxu0 0
        %569 = vmatpush1.bf16.msra.mxu0 0
        %570 = vmatprep.subr.bf16.mxu0 0
        %571 = vmatpush1.bf16.msra.mxu0 %v552
        %572 = vmatprep.subr.bf16.mxu0 0
        %573 = vmatpush1.bf16.msra.mxu0 %v551
        %574 = vmatprep.subr.bf16.mxu0 0
        %575 = vmatpush2.bf16.msra.mxu0 0
        %576 = vmatprep.subr.bf16.mxu0 0
        %577 = vmatpush2.bf16.msra.mxu0 0
        %578 = vmatprep.subr.bf16.mxu0 0
        %579 = vmatpush2.bf16.msra.mxu0 0
        %580 = vmatprep.subr.bf16.mxu0 0
        %581 = vmatpush2.bf16.msra.mxu0 0
        %582 = vmatprep.subr.bf16.mxu0 0
        %583 = vmatpush2.bf16.msra.mxu0 0
        %584 = vmatprep.subr.bf16.mxu0 0
        %585 = vmatpush2.bf16.msra.mxu0 0
        %586 = vmatprep.subr.bf16.mxu0 0
        %587 = vmatpush2.bf16.msra.mxu0 0
        %588 = vmatprep.subr.bf16.mxu0 0
        %589 = vmatpush2.bf16.msra.mxu0 0
        %590 = vmatprep.mubr.bf16.mxu0 0
        %591 = vmatmul.mubr.bf16.gmra.mxu0 %v556
        %v592 = vpop.f32.mrf.mxu0
        %v593 = vadd.f32 0.0, %v592
        %v594 = vpop.f32.mrf.mxu0
        %v595 = vpop.f32.mrf.mxu0
        %v596 = vpop.f32.mrf.mxu0
        %597 = vdwg.mxu0
        %v598 = vpack.c.bf16 %v593, %v593
        %600 = vrot.lane.b32.xlu0 %v598, 120
        %v601 = vpop.permute.xlu0 %600
        %602 = vrot.lane.b32.xlu0 %v598, 112
        %v603 = vpop.permute.xlu0 %602
        %604 = vrot.lane.b32.xlu0 %v598, 104
        %v605 = vpop.permute.xlu0 %604
        %v606 = vlaneseq
        %v607 = vand.u32 %v606, 127
        %v608 = vlaneseq
        %v609 = vshrl.u32 %v608, 7
        %vm610 = vcmp.le.s32.totalorder %v607, %v609
        %v611 = vsub.s32 %v607, %v609
        %vm612 = vcmp.gt.s32.totalorder %v611, 0
        %v613 = vsel %vm612, %v611, 0
        %v614 = vcvt.s32.f32 %v613
        %v615 = vmul.f32 %v614, 0.25
        %v616 = vsel %vm610, %v615, -1e+30
        %v617 = vmul.f32 %v614, 0.0625
        %v618 = vsel %vm610, %v617, -1e+30
        %v619 = vmul.f32 %v614, 0.015625
        %v620 = vsel %vm610, %v619, -1e+30
        %v621 = vmul.f32 %v614, 0.00390625
        %v622 = vsel %vm610, %v621, -1e+30
        %623 = vrot.lane.b32.xlu0 %v598, 96
        %v624 = vpop.permute.xlu0 %623
        %vm625 = vcmask 64512
        %v627 = vsel %vm625, %v598, 0
        %v630 = vsel %vm625, %v624, 0
        %632 = vmatprep.subr.bf16.mxu0 0
        %633 = vmatpush1.bf16.xpose.msra.mxu0 0
        %634 = vmatprep.subr.bf16.mxu0 0
        %635 = vmatpush1.bf16.xpose.msra.mxu0 0
        %636 = vmatprep.subr.bf16.mxu0 0
        %637 = vmatpush1.bf16.xpose.msra.mxu0 0
        %638 = vmatprep.subr.bf16.mxu0 0
        %639 = vmatpush1.bf16.xpose.msra.mxu0 0
        %640 = vmatprep.subr.bf16.mxu0 0
        %641 = vmatpush1.bf16.xpose.msra.mxu0 0
        %642 = vmatprep.subr.bf16.mxu0 0
        %643 = vmatpush1.bf16.xpose.msra.mxu0 0
        %644 = vmatprep.subr.bf16.mxu0 0
        %645 = vmatpush1.bf16.xpose.msra.mxu0 0
        %646 = vmatprep.subr.bf16.mxu0 0
        %647 = vmatpush1.bf16.xpose.msra.mxu0 %v630
        %648 = vmatprep.subr.bf16.mxu0 0
        %649 = vmatpush2.bf16.xpose.msra.mxu0 0
        %650 = vmatprep.subr.bf16.mxu0 0
        %651 = vmatpush2.bf16.xpose.msra.mxu0 0
        %652 = vmatprep.subr.bf16.mxu0 0
        %653 = vmatpush2.bf16.xpose.msra.mxu0 0
        %654 = vmatprep.subr.bf16.mxu0 0
        %655 = vmatpush2.bf16.xpose.msra.mxu0 0
        %656 = vmatprep.subr.bf16.mxu0 0
        %657 = vmatpush2.bf16.xpose.msra.mxu0 0
        %658 = vmatprep.subr.bf16.mxu0 0
        %659 = vmatpush2.bf16.xpose.msra.mxu0 0
        %660 = vmatprep.subr.bf16.mxu0 0
        %661 = vmatpush2.bf16.xpose.msra.mxu0 0
        %662 = vmatprep.subr.bf16.mxu0 0
        %663 = vmatpush2.bf16.xpose.msra.mxu0 0
        %664 = vmatprep.mubr.bf16.mxu0 0
        %665 = vmatmul.mubr.bf16.gmra.mxu0 %v627
        %v666 = vpop.f32.mrf.mxu0
        %v667 = vadd.f32 0.0, %v666
        %v668 = vpop.f32.mrf.mxu0
        %v669 = vpop.f32.mrf.mxu0
        %v670 = vpop.f32.mrf.mxu0
        %671 = vdwg.mxu0
        %672 = vrot.lane.b32.xlu0 %v601, 96
        %v673 = vpop.permute.xlu0 %672
        %v675 = vsel %vm625, %v601, 0
        %v678 = vsel %vm625, %v673, 0
        %680 = vmatprep.subr.bf16.mxu0 0
        %681 = vmatpush1.bf16.xpose.msra.mxu0 0
        %682 = vmatprep.subr.bf16.mxu0 0
        %683 = vmatpush1.bf16.xpose.msra.mxu0 0
        %684 = vmatprep.subr.bf16.mxu0 0
        %685 = vmatpush1.bf16.xpose.msra.mxu0 0
        %686 = vmatprep.subr.bf16.mxu0 0
        %687 = vmatpush1.bf16.xpose.msra.mxu0 0
        %688 = vmatprep.subr.bf16.mxu0 0
        %689 = vmatpush1.bf16.xpose.msra.mxu0 0
        %690 = vmatprep.subr.bf16.mxu0 0
        %691 = vmatpush1.bf16.xpose.msra.mxu0 0
        %692 = vmatprep.subr.bf16.mxu0 0
        %693 = vmatpush1.bf16.xpose.msra.mxu0 0
        %694 = vmatprep.subr.bf16.mxu0 0
        %695 = vmatpush1.bf16.xpose.msra.mxu0 %v678
        %696 = vmatprep.subr.bf16.mxu0 0
        %697 = vmatpush2.bf16.xpose.msra.mxu0 0
        %698 = vmatprep.subr.bf16.mxu0 0
        %699 = vmatpush2.bf16.xpose.msra.mxu0 0
        %700 = vmatprep.subr.bf16.mxu0 0
        %701 = vmatpush2.bf16.xpose.msra.mxu0 0
        %702 = vmatprep.subr.bf16.mxu0 0
        %703 = vmatpush2.bf16.xpose.msra.mxu0 0
        %704 = vmatprep.subr.bf16.mxu0 0
        %705 = vmatpush2.bf16.xpose.msra.mxu0 0
        %706 = vmatprep.subr.bf16.mxu0 0
        %707 = vmatpush2.bf16.xpose.msra.mxu0 0
        %708 = vmatprep.subr.bf16.mxu0 0
        %709 = vmatpush2.bf16.xpose.msra.mxu0 0
        %710 = vmatprep.subr.bf16.mxu0 0
        %711 = vmatpush2.bf16.xpose.msra.mxu0 0
        %712 = vmatprep.mubr.bf16.mxu0 0
        %713 = vmatmul.mubr.bf16.gmra.mxu0 %v675
        %v714 = vpop.f32.mrf.mxu0
        %v715 = vadd.f32 0.0, %v714
        %v716 = vpop.f32.mrf.mxu0
        %v717 = vpop.f32.mrf.mxu0
        %v718 = vpop.f32.mrf.mxu0
        %719 = vdwg.mxu0
        %720 = vrot.lane.b32.xlu0 %v603, 96
        %v721 = vpop.permute.xlu0 %720
        %v723 = vsel %vm625, %v603, 0
        %v726 = vsel %vm625, %v721, 0
        %728 = vmatprep.subr.bf16.mxu0 0
        %729 = vmatpush1.bf16.xpose.msra.mxu0 0
        %730 = vmatprep.subr.bf16.mxu0 0
        %731 = vmatpush1.bf16.xpose.msra.mxu0 0
        %732 = vmatprep.subr.bf16.mxu0 0
        %733 = vmatpush1.bf16.xpose.msra.mxu0 0
        %734 = vmatprep.subr.bf16.mxu0 0
        %735 = vmatpush1.bf16.xpose.msra.mxu0 0
        %736 = vmatprep.subr.bf16.mxu0 0
        %737 = vmatpush1.bf16.xpose.msra.mxu0 0
        %738 = vmatprep.subr.bf16.mxu0 0
        %739 = vmatpush1.bf16.xpose.msra.mxu0 0
        %740 = vmatprep.subr.bf16.mxu0 0
        %741 = vmatpush1.bf16.xpose.msra.mxu0 0
        %742 = vmatprep.subr.bf16.mxu0 0
        %743 = vmatpush1.bf16.xpose.msra.mxu0 %v726
        %744 = vmatprep.subr.bf16.mxu0 0
        %745 = vmatpush2.bf16.xpose.msra.mxu0 0
        %746 = vmatprep.subr.bf16.mxu0 0
        %747 = vmatpush2.bf16.xpose.msra.mxu0 0
        %748 = vmatprep.subr.bf16.mxu0 0
        %749 = vmatpush2.bf16.xpose.msra.mxu0 0
        %750 = vmatprep.subr.bf16.mxu0 0
        %751 = vmatpush2.bf16.xpose.msra.mxu0 0
        %752 = vmatprep.subr.bf16.mxu0 0
        %753 = vmatpush2.bf16.xpose.msra.mxu0 0
        %754 = vmatprep.subr.bf16.mxu0 0
        %755 = vmatpush2.bf16.xpose.msra.mxu0 0
        %756 = vmatprep.subr.bf16.mxu0 0
        %757 = vmatpush2.bf16.xpose.msra.mxu0 0
        %758 = vmatprep.subr.bf16.mxu0 0
        %759 = vmatpush2.bf16.xpose.msra.mxu0 0
        %760 = vmatprep.mubr.bf16.mxu0 0
        %761 = vmatmul.mubr.bf16.gmra.mxu0 %v723
        %v762 = vpop.f32.mrf.mxu0
        %v763 = vadd.f32 0.0, %v762
        %v764 = vpop.f32.mrf.mxu0
        %v765 = vpop.f32.mrf.mxu0
        %v766 = vpop.f32.mrf.mxu0
        %767 = vdwg.mxu0
        %768 = vrot.lane.b32.xlu0 %v605, 96
        %v769 = vpop.permute.xlu0 %768
        %v771 = vsel %vm625, %v605, 0
        %v774 = vsel %vm625, %v769, 0
        %776 = vmatprep.subr.bf16.mxu0 0
        %777 = vmatpush1.bf16.xpose.msra.mxu0 0
        %778 = vmatprep.subr.bf16.mxu0 0
        %779 = vmatpush1.bf16.xpose.msra.mxu0 0
        %780 = vmatprep.subr.bf16.mxu0 0
        %781 = vmatpush1.bf16.xpose.msra.mxu0 0
        %782 = vmatprep.subr.bf16.mxu0 0
        %783 = vmatpush1.bf16.xpose.msra.mxu0 0
        %784 = vmatprep.subr.bf16.mxu0 0
        %785 = vmatpush1.bf16.xpose.msra.mxu0 0
        %786 = vmatprep.subr.bf16.mxu0 0
        %787 = vmatpush1.bf16.xpose.msra.mxu0 0
        %788 = vmatprep.subr.bf16.mxu0 0
        %789 = vmatpush1.bf16.xpose.msra.mxu0 0
        %790 = vmatprep.subr.bf16.mxu0 0
        %791 = vmatpush1.bf16.xpose.msra.mxu0 %v774
        %792 = vmatprep.subr.bf16.mxu0 0
        %793 = vmatpush2.bf16.xpose.msra.mxu0 0
        %794 = vmatprep.subr.bf16.mxu0 0
        %795 = vmatpush2.bf16.xpose.msra.mxu0 0
        %796 = vmatprep.subr.bf16.mxu0 0
        %797 = vmatpush2.bf16.xpose.msra.mxu0 0
        %798 = vmatprep.subr.bf16.mxu0 0
        %799 = vmatpush2.bf16.xpose.msra.mxu0 0
        %800 = vmatprep.subr.bf16.mxu0 0
        %801 = vmatpush2.bf16.xpose.msra.mxu0 0
        %802 = vmatprep.subr.bf16.mxu0 0
        %803 = vmatpush2.bf16.xpose.msra.mxu0 0
        %804 = vmatprep.subr.bf16.mxu0 0
        %805 = vmatpush2.bf16.xpose.msra.mxu0 0
        %806 = vmatprep.subr.bf16.mxu0 0
        %807 = vmatpush2.bf16.xpose.msra.mxu0 0
        %808 = vmatprep.mubr.bf16.mxu0 0
        %809 = vmatmul.mubr.bf16.gmra.mxu0 %v771
        %v810 = vpop.f32.mrf.mxu0
        %v811 = vadd.f32 0.0, %v810
        %v812 = vpop.f32.mrf.mxu0
        %v813 = vpop.f32.mrf.mxu0
        %v814 = vpop.f32.mrf.mxu0
        %815 = vdwg.mxu0
        %v816 = vmul.f32 %v667, 0.35355338
        %v817 = vmul.f32 %v715, 0.35355338
        %v818 = vmul.f32 %v763, 0.35355338
        %v819 = vmul.f32 %v811, 0.35355338
        %v820 = vadd.f32 %v816, %v616
        %v821 = vadd.f32 %v817, %v618
        %v822 = vadd.f32 %v818, %v620
        %v823 = vadd.f32 %v819, %v622
        %v824 = vsel %vm625, %v820, -inf
        %825 = vmax.xlane.f32.xlu0 %v824
        %v826 = vpop.xlane.xlu0 %825
        %v827 = vsel %vm625, %v821, -inf
        %828 = vmax.xlane.f32.xlu0 %v827
        %v829 = vpop.xlane.xlu0 %828
        %v830 = vsel %vm625, %v822, -inf
        %831 = vmax.xlane.f32.xlu0 %v830
        %v832 = vpop.xlane.xlu0 %831
        %v833 = vsel %vm625, %v823, -inf
        %834 = vmax.xlane.f32.xlu0 %v833
        %v835 = vpop.xlane.xlu0 %834
        %v836 = vsub.f32 %v820, %v826
        %v837 = vsub.f32 %v821, %v829
        %v838 = vsub.f32 %v822, %v832
        %v839 = vsub.f32 %v823, %v835
        %v840 = vmul.f32 %v836, 1.442695
        %v841 = vpow.pop %v840
        %v842 = vmul.f32 %v837, 1.442695
        %v843 = vpow.pop %v842
        %v844 = vmul.f32 %v838, 1.442695
        %v845 = vpow.pop %v844
        %v846 = vmul.f32 %v839, 1.442695
        %v847 = vpow.pop %v846
        %v848 = vsel %vm625, %v841, 0.0
        %849 = vadd.xlane.f32.xlu0 %v848
        %v850 = vpop.xlane.xlu0 %849
        %v851 = vsel %vm625, %v843, 0.0
        %852 = vadd.xlane.f32.xlu0 %v851
        %v853 = vpop.xlane.xlu0 %852
        %v854 = vsel %vm625, %v845, 0.0
        %855 = vadd.xlane.f32.xlu0 %v854
        %v856 = vpop.xlane.xlu0 %855
        %v857 = vsel %vm625, %v847, 0.0
        %858 = vadd.xlane.f32.xlu0 %v857
        %v859 = vpop.xlane.xlu0 %858
        %v860 = vpack.c.bf16 %v841, %v841
        %v861 = vpack.c.bf16 %v843, %v843
        %v862 = vpack.c.bf16 %v845, %v845
        %v863 = vpack.c.bf16 %v847, %v847
        %864 = vrot.lane.b32.xlu0 %v598, 64
        %v865 = vpop.permute.xlu0 %864
        %v867 = vsel %vm625, %v860, 0
        %vm869 = vcmask 1043456
        %v871 = vsel %vm869, %v865, 0
        %873 = vmatprep.subr.bf16.mxu0 0
        %874 = vmatpush1.bf16.msra.mxu0 0
        %875 = vmatprep.subr.bf16.mxu0 0
        %876 = vmatpush1.bf16.msra.mxu0 0
        %877 = vmatprep.subr.bf16.mxu0 0
        %878 = vmatpush1.bf16.msra.mxu0 0
        %879 = vmatprep.subr.bf16.mxu0 0
        %880 = vmatpush1.bf16.msra.mxu0 0
        %881 = vmatprep.subr.bf16.mxu0 0
        %882 = vmatpush1.bf16.msra.mxu0 0
        %883 = vmatprep.subr.bf16.mxu0 0
        %884 = vmatpush1.bf16.msra.mxu0 0
        %885 = vmatprep.subr.bf16.mxu0 0
        %886 = vmatpush1.bf16.msra.mxu0 0
        %887 = vmatprep.subr.bf16.mxu0 0
        %888 = vmatpush1.bf16.msra.mxu0 %v871
        %889 = vmatprep.subr.bf16.mxu0 0
        %890 = vmatpush2.bf16.msra.mxu0 0
        %891 = vmatprep.subr.bf16.mxu0 0
        %892 = vmatpush2.bf16.msra.mxu0 0
        %893 = vmatprep.subr.bf16.mxu0 0
        %894 = vmatpush2.bf16.msra.mxu0 0
        %895 = vmatprep.subr.bf16.mxu0 0
        %896 = vmatpush2.bf16.msra.mxu0 0
        %897 = vmatprep.subr.bf16.mxu0 0
        %898 = vmatpush2.bf16.msra.mxu0 0
        %899 = vmatprep.subr.bf16.mxu0 0
        %900 = vmatpush2.bf16.msra.mxu0 0
        %901 = vmatprep.subr.bf16.mxu0 0
        %902 = vmatpush2.bf16.msra.mxu0 0
        %903 = vmatprep.subr.bf16.mxu0 0
        %904 = vmatpush2.bf16.msra.mxu0 0
        %905 = vmatprep.mubr.bf16.mxu0 0
        %906 = vmatmul.mubr.bf16.gmra.mxu0 %v867
        %v907 = vpop.f32.mrf.mxu0
        %v908 = vadd.f32 0.0, %v907
        %v909 = vpop.f32.mrf.mxu0
        %v910 = vpop.f32.mrf.mxu0
        %v911 = vpop.f32.mrf.mxu0
        %912 = vdwg.mxu0
        %913 = vrot.lane.b32.xlu0 %v601, 64
        %v914 = vpop.permute.xlu0 %913
        %v916 = vsel %vm625, %v861, 0
        %v919 = vsel %vm869, %v914, 0
        %921 = vmatprep.subr.bf16.mxu0 0
        %922 = vmatpush1.bf16.msra.mxu0 0
        %923 = vmatprep.subr.bf16.mxu0 0
        %924 = vmatpush1.bf16.msra.mxu0 0
        %925 = vmatprep.subr.bf16.mxu0 0
        %926 = vmatpush1.bf16.msra.mxu0 0
        %927 = vmatprep.subr.bf16.mxu0 0
        %928 = vmatpush1.bf16.msra.mxu0 0
        %929 = vmatprep.subr.bf16.mxu0 0
        %930 = vmatpush1.bf16.msra.mxu0 0
        %931 = vmatprep.subr.bf16.mxu0 0
        %932 = vmatpush1.bf16.msra.mxu0 0
        %933 = vmatprep.subr.bf16.mxu0 0
        %934 = vmatpush1.bf16.msra.mxu0 0
        %935 = vmatprep.subr.bf16.mxu0 0
        %936 = vmatpush1.bf16.msra.mxu0 %v919
        %937 = vmatprep.subr.bf16.mxu0 0
        %938 = vmatpush2.bf16.msra.mxu0 0
        %939 = vmatprep.subr.bf16.mxu0 0
        %940 = vmatpush2.bf16.msra.mxu0 0
        %941 = vmatprep.subr.bf16.mxu0 0
        %942 = vmatpush2.bf16.msra.mxu0 0
        %943 = vmatprep.subr.bf16.mxu0 0
        %944 = vmatpush2.bf16.msra.mxu0 0
        %945 = vmatprep.subr.bf16.mxu0 0
        %946 = vmatpush2.bf16.msra.mxu0 0
        %947 = vmatprep.subr.bf16.mxu0 0
        %948 = vmatpush2.bf16.msra.mxu0 0
        %949 = vmatprep.subr.bf16.mxu0 0
        %950 = vmatpush2.bf16.msra.mxu0 0
        %951 = vmatprep.subr.bf16.mxu0 0
        %952 = vmatpush2.bf16.msra.mxu0 0
        %953 = vmatprep.mubr.bf16.mxu0 0
        %954 = vmatmul.mubr.bf16.gmra.mxu0 %v916
        %v955 = vpop.f32.mrf.mxu0
        %v956 = vadd.f32 0.0, %v955
        %v957 = vpop.f32.mrf.mxu0
        %v958 = vpop.f32.mrf.mxu0
        %v959 = vpop.f32.mrf.mxu0
        %960 = vdwg.mxu0
        %961 = vrot.lane.b32.xlu0 %v603, 64
        %v962 = vpop.permute.xlu0 %961
        %v964 = vsel %vm625, %v862, 0
        %v967 = vsel %vm869, %v962, 0
        %969 = vmatprep.subr.bf16.mxu0 0
        %970 = vmatpush1.bf16.msra.mxu0 0
        %971 = vmatprep.subr.bf16.mxu0 0
        %972 = vmatpush1.bf16.msra.mxu0 0
        %973 = vmatprep.subr.bf16.mxu0 0
        %974 = vmatpush1.bf16.msra.mxu0 0
        %975 = vmatprep.subr.bf16.mxu0 0
        %976 = vmatpush1.bf16.msra.mxu0 0
        %977 = vmatprep.subr.bf16.mxu0 0
        %978 = vmatpush1.bf16.msra.mxu0 0
        %979 = vmatprep.subr.bf16.mxu0 0
        %980 = vmatpush1.bf16.msra.mxu0 0
        %981 = vmatprep.subr.bf16.mxu0 0
        %982 = vmatpush1.bf16.msra.mxu0 0
        %983 = vmatprep.subr.bf16.mxu0 0
        %984 = vmatpush1.bf16.msra.mxu0 %v967
        %985 = vmatprep.subr.bf16.mxu0 0
        %986 = vmatpush2.bf16.msra.mxu0 0
        %987 = vmatprep.subr.bf16.mxu0 0
        %988 = vmatpush2.bf16.msra.mxu0 0
        %989 = vmatprep.subr.bf16.mxu0 0
        %990 = vmatpush2.bf16.msra.mxu0 0
        %991 = vmatprep.subr.bf16.mxu0 0
        %992 = vmatpush2.bf16.msra.mxu0 0
        %993 = vmatprep.subr.bf16.mxu0 0
        %994 = vmatpush2.bf16.msra.mxu0 0
        %995 = vmatprep.subr.bf16.mxu0 0
        %996 = vmatpush2.bf16.msra.mxu0 0
        %997 = vmatprep.subr.bf16.mxu0 0
        %998 = vmatpush2.bf16.msra.mxu0 0
        %999 = vmatprep.subr.bf16.mxu0 0
        %1000 = vmatpush2.bf16.msra.mxu0 0
        %1001 = vmatprep.mubr.bf16.mxu0 0
        %1002 = vmatmul.mubr.bf16.gmra.mxu0 %v964
        %v1003 = vpop.f32.mrf.mxu0
        %v1004 = vadd.f32 0.0, %v1003
        %v1005 = vpop.f32.mrf.mxu0
        %v1006 = vpop.f32.mrf.mxu0
        %v1007 = vpop.f32.mrf.mxu0
        %1008 = vdwg.mxu0
        %1009 = vrot.lane.b32.xlu0 %v605, 64
        %v1010 = vpop.permute.xlu0 %1009
        %v1012 = vsel %vm625, %v863, 0
        %v1015 = vsel %vm869, %v1010, 0
        %1017 = vmatprep.subr.bf16.mxu0 0
        %1018 = vmatpush1.bf16.msra.mxu0 0
        %1019 = vmatprep.subr.bf16.mxu0 0
        %1020 = vmatpush1.bf16.msra.mxu0 0
        %1021 = vmatprep.subr.bf16.mxu0 0
        %1022 = vmatpush1.bf16.msra.mxu0 0
        %1023 = vmatprep.subr.bf16.mxu0 0
        %1024 = vmatpush1.bf16.msra.mxu0 0
        %1025 = vmatprep.subr.bf16.mxu0 0
        %1026 = vmatpush1.bf16.msra.mxu0 0
        %1027 = vmatprep.subr.bf16.mxu0 0
        %1028 = vmatpush1.bf16.msra.mxu0 0
        %1029 = vmatprep.subr.bf16.mxu0 0
        %1030 = vmatpush1.bf16.msra.mxu0 0
        %1031 = vmatprep.subr.bf16.mxu0 0
        %1032 = vmatpush1.bf16.msra.mxu0 %v1015
        %1033 = vmatprep.subr.bf16.mxu0 0
        %1034 = vmatpush2.bf16.msra.mxu0 0
        %1035 = vmatprep.subr.bf16.mxu0 0
        %1036 = vmatpush2.bf16.msra.mxu0 0
        %1037 = vmatprep.subr.bf16.mxu0 0
        %1038 = vmatpush2.bf16.msra.mxu0 0
        %1039 = vmatprep.subr.bf16.mxu0 0
        %1040 = vmatpush2.bf16.msra.mxu0 0
        %1041 = vmatprep.subr.bf16.mxu0 0
        %1042 = vmatpush2.bf16.msra.mxu0 0
        %1043 = vmatprep.subr.bf16.mxu0 0
        %1044 = vmatpush2.bf16.msra.mxu0 0
        %1045 = vmatprep.subr.bf16.mxu0 0
        %1046 = vmatpush2.bf16.msra.mxu0 0
        %1047 = vmatprep.subr.bf16.mxu0 0
        %1048 = vmatpush2.bf16.msra.mxu0 0
        %1049 = vmatprep.mubr.bf16.mxu0 0
        %1050 = vmatmul.mubr.bf16.gmra.mxu0 %v1012
        %v1051 = vpop.f32.mrf.mxu0
        %v1052 = vadd.f32 0.0, %v1051
        %v1053 = vpop.f32.mrf.mxu0
        %v1054 = vpop.f32.mrf.mxu0
        %v1055 = vpop.f32.mrf.mxu0
        %1056 = vdwg.mxu0
        %v1057 = vrcp.pop %v850
        %v1058 = vrcp.pop %v853
        %v1059 = vrcp.pop %v856
        %v1060 = vrcp.pop %v859
        %v1061 = vmul.f32 %v908, %v1057
        %v1062 = vmul.f32 %v956, %v1058
        %v1063 = vmul.f32 %v1004, %v1059
        %v1064 = vmul.f32 %v1052, %v1060
        %v1065 = vpack.c.bf16 %v1061, %v1061
        %v1066 = vpack.c.bf16 %v1062, %v1062
        %v1067 = vpack.c.bf16 %v1063, %v1063
        %v1068 = vpack.c.bf16 %v1064, %v1064
        %v1069 = vld [vmem:[#allocation6] sm:$0xf]
        %v1070 = vld [vmem:[#allocation6 + $0x4] sm:$0xf]
        %v1071 = vld [vmem:[#allocation6 + $0x8] sm:$0xf]
        %v1072 = vld [vmem:[#allocation6 + $0xc] sm:$0xf]
        %v1074 = vsel %vm625, %v1065, 0
        %v1077 = vsel %vm869, %v1069, 0
        %1079 = vmatprep.subr.bf16.mxu0 0
        %1080 = vmatpush1.bf16.msra.mxu0 0
        %1081 = vmatprep.subr.bf16.mxu0 0
        %1082 = vmatpush1.bf16.msra.mxu0 0
        %1083 = vmatprep.subr.bf16.mxu0 0
        %1084 = vmatpush1.bf16.msra.mxu0 0
        %1085 = vmatprep.subr.bf16.mxu0 0
        %1086 = vmatpush1.bf16.msra.mxu0 0
        %1087 = vmatprep.subr.bf16.mxu0 0
        %1088 = vmatpush1.bf16.msra.mxu0 0
        %1089 = vmatprep.subr.bf16.mxu0 0
        %1090 = vmatpush1.bf16.msra.mxu0 0
        %1091 = vmatprep.subr.bf16.mxu0 0
        %1092 = vmatpush1.bf16.msra.mxu0 0
        %1093 = vmatprep.subr.bf16.mxu0 0
        %1094 = vmatpush1.bf16.msra.mxu0 %v1077
        %1095 = vmatprep.subr.bf16.mxu0 0
        %1096 = vmatpush2.bf16.msra.mxu0 0
        %1097 = vmatprep.subr.bf16.mxu0 0
        %1098 = vmatpush2.bf16.msra.mxu0 0
        %1099 = vmatprep.subr.bf16.mxu0 0
        %1100 = vmatpush2.bf16.msra.mxu0 0
        %1101 = vmatprep.subr.bf16.mxu0 0
        %1102 = vmatpush2.bf16.msra.mxu0 0
        %1103 = vmatprep.subr.bf16.mxu0 0
        %1104 = vmatpush2.bf16.msra.mxu0 0
        %1105 = vmatprep.subr.bf16.mxu0 0
        %1106 = vmatpush2.bf16.msra.mxu0 0
        %1107 = vmatprep.subr.bf16.mxu0 0
        %1108 = vmatpush2.bf16.msra.mxu0 0
        %1109 = vmatprep.subr.bf16.mxu0 0
        %1110 = vmatpush2.bf16.msra.mxu0 0
        %1111 = vmatprep.mubr.bf16.mxu0 0
        %1112 = vmatmul.mubr.bf16.gmra.mxu0 %v1074
        %v1113 = vpop.f32.mrf.mxu0
        %v1114 = vadd.f32 0.0, %v1113
        %v1115 = vpop.f32.mrf.mxu0
        %v1116 = vpop.f32.mrf.mxu0
        %v1117 = vpop.f32.mrf.mxu0
        %1118 = vdwg.mxu0
        %v1120 = vsel %vm625, %v1066, 0
        %v1123 = vsel %vm869, %v1070, 0
        %1125 = vmatprep.subr.bf16.mxu0 0
        %1126 = vmatpush1.bf16.msra.mxu0 0
        %1127 = vmatprep.subr.bf16.mxu0 0
        %1128 = vmatpush1.bf16.msra.mxu0 0
        %1129 = vmatprep.subr.bf16.mxu0 0
        %1130 = vmatpush1.bf16.msra.mxu0 0
        %1131 = vmatprep.subr.bf16.mxu0 0
        %1132 = vmatpush1.bf16.msra.mxu0 0
        %1133 = vmatprep.subr.bf16.mxu0 0
        %1134 = vmatpush1.bf16.msra.mxu0 0
        %1135 = vmatprep.subr.bf16.mxu0 0
        %1136 = vmatpush1.bf16.msra.mxu0 0
        %1137 = vmatprep.subr.bf16.mxu0 0
        %1138 = vmatpush1.bf16.msra.mxu0 0
        %1139 = vmatprep.subr.bf16.mxu0 0
        %1140 = vmatpush1.bf16.msra.mxu0 %v1123
        %1141 = vmatprep.subr.bf16.mxu0 0
        %1142 = vmatpush2.bf16.msra.mxu0 0
        %1143 = vmatprep.subr.bf16.mxu0 0
        %1144 = vmatpush2.bf16.msra.mxu0 0
        %1145 = vmatprep.subr.bf16.mxu0 0
        %1146 = vmatpush2.bf16.msra.mxu0 0
        %1147 = vmatprep.subr.bf16.mxu0 0
        %1148 = vmatpush2.bf16.msra.mxu0 0
        %1149 = vmatprep.subr.bf16.mxu0 0
        %1150 = vmatpush2.bf16.msra.mxu0 0
        %1151 = vmatprep.subr.bf16.mxu0 0
        %1152 = vmatpush2.bf16.msra.mxu0 0
        %1153 = vmatprep.subr.bf16.mxu0 0
        %1154 = vmatpush2.bf16.msra.mxu0 0
        %1155 = vmatprep.subr.bf16.mxu0 0
        %1156 = vmatpush2.bf16.msra.mxu0 0
        %1157 = vmatprep.mubr.bf16.mxu0 0
        %1158 = vmatmul.mubr.bf16.gmra.mxu0 %v1120
        %v1159 = vpop.f32.mrf.mxu0
        %v1160 = vadd.f32 0.0, %v1159
        %v1161 = vpop.f32.mrf.mxu0
        %v1162 = vpop.f32.mrf.mxu0
        %v1163 = vpop.f32.mrf.mxu0
        %1164 = vdwg.mxu0
        %v1166 = vsel %vm625, %v1067, 0
        %v1169 = vsel %vm869, %v1071, 0
        %1171 = vmatprep.subr.bf16.mxu0 0
        %1172 = vmatpush1.bf16.msra.mxu0 0
        %1173 = vmatprep.subr.bf16.mxu0 0
        %1174 = vmatpush1.bf16.msra.mxu0 0
        %1175 = vmatprep.subr.bf16.mxu0 0
        %1176 = vmatpush1.bf16.msra.mxu0 0
        %1177 = vmatprep.subr.bf16.mxu0 0
        %1178 = vmatpush1.bf16.msra.mxu0 0
        %1179 = vmatprep.subr.bf16.mxu0 0
        %1180 = vmatpush1.bf16.msra.mxu0 0
        %1181 = vmatprep.subr.bf16.mxu0 0
        %1182 = vmatpush1.bf16.msra.mxu0 0
        %1183 = vmatprep.subr.bf16.mxu0 0
        %1184 = vmatpush1.bf16.msra.mxu0 0
        %1185 = vmatprep.subr.bf16.mxu0 0
        %1186 = vmatpush1.bf16.msra.mxu0 %v1169
        %1187 = vmatprep.subr.bf16.mxu0 0
        %1188 = vmatpush2.bf16.msra.mxu0 0
        %1189 = vmatprep.subr.bf16.mxu0 0
        %1190 = vmatpush2.bf16.msra.mxu0 0
        %1191 = vmatprep.subr.bf16.mxu0 0
        %1192 = vmatpush2.bf16.msra.mxu0 0
        %1193 = vmatprep.subr.bf16.mxu0 0
        %1194 = vmatpush2.bf16.msra.mxu0 0
        %1195 = vmatprep.subr.bf16.mxu0 0
        %1196 = vmatpush2.bf16.msra.mxu0 0
        %1197 = vmatprep.subr.bf16.mxu0 0
        %1198 = vmatpush2.bf16.msra.mxu0 0
        %1199 = vmatprep.subr.bf16.mxu0 0
        %1200 = vmatpush2.bf16.msra.mxu0 0
        %1201 = vmatprep.subr.bf16.mxu0 0
        %1202 = vmatpush2.bf16.msra.mxu0 0
        %1203 = vmatprep.mubr.bf16.mxu0 0
        %1204 = vmatmul.mubr.bf16.gmra.mxu0 %v1166
        %v1205 = vpop.f32.mrf.mxu0
        %v1206 = vadd.f32 0.0, %v1205
        %v1207 = vpop.f32.mrf.mxu0
        %v1208 = vpop.f32.mrf.mxu0
        %v1209 = vpop.f32.mrf.mxu0
        %1210 = vdwg.mxu0
        %v1212 = vsel %vm625, %v1068, 0
        %v1215 = vsel %vm869, %v1072, 0
        %1217 = vmatprep.subr.bf16.mxu0 0
        %1218 = vmatpush1.bf16.msra.mxu0 0
        %1219 = vmatprep.subr.bf16.mxu0 0
        %1220 = vmatpush1.bf16.msra.mxu0 0
        %1221 = vmatprep.subr.bf16.mxu0 0
        %1222 = vmatpush1.bf16.msra.mxu0 0
        %1223 = vmatprep.subr.bf16.mxu0 0
        %1224 = vmatpush1.bf16.msra.mxu0 0
        %1225 = vmatprep.subr.bf16.mxu0 0
        %1226 = vmatpush1.bf16.msra.mxu0 0
        %1227 = vmatprep.subr.bf16.mxu0 0
        %1228 = vmatpush1.bf16.msra.mxu0 0
        %1229 = vmatprep.subr.bf16.mxu0 0
        %1230 = vmatpush1.bf16.msra.mxu0 0
        %1231 = vmatprep.subr.bf16.mxu0 0
        %1232 = vmatpush1.bf16.msra.mxu0 %v1215
        %1233 = vmatprep.subr.bf16.mxu0 0
        %1234 = vmatpush2.bf16.msra.mxu0 0
        %1235 = vmatprep.subr.bf16.mxu0 0
        %1236 = vmatpush2.bf16.msra.mxu0 0
        %1237 = vmatprep.subr.bf16.mxu0 0
        %1238 = vmatpush2.bf16.msra.mxu0 0
        %1239 = vmatprep.subr.bf16.mxu0 0
        %1240 = vmatpush2.bf16.msra.mxu0 0
        %1241 = vmatprep.subr.bf16.mxu0 0
        %1242 = vmatpush2.bf16.msra.mxu0 0
        %1243 = vmatprep.subr.bf16.mxu0 0
        %1244 = vmatpush2.bf16.msra.mxu0 0
        %1245 = vmatprep.subr.bf16.mxu0 0
        %1246 = vmatpush2.bf16.msra.mxu0 0
        %1247 = vmatprep.subr.bf16.mxu0 0
        %1248 = vmatpush2.bf16.msra.mxu0 0
        %1249 = vmatprep.mubr.bf16.mxu0 0
        %1250 = vmatmul.mubr.bf16.gmra.mxu0 %v1212
        %v1251 = vpop.f32.mrf.mxu0
        %v1252 = vadd.f32 0.0, %v1251
        %v1253 = vpop.f32.mrf.mxu0
        %v1254 = vpop.f32.mrf.mxu0
        %v1255 = vpop.f32.mrf.mxu0
        %1256 = vdwg.mxu0
        %v1257 = vsel %vm509, %v1114, 0.0
        %v1258 = vsel %vm509, %v1160, 0.0
        %v1259 = vadd.f32 %v1257, %v1258
        %v1260 = vsel %vm509, %v1206, 0.0
        %v1261 = vadd.f32 %v1259, %v1260
        %v1262 = vsel %vm509, %v1252, 0.0
        %v1263 = vadd.f32 %v1261, %v1262
        %v1264 = vpack.c.bf16 %v1263, %v1263
        %v1265 = vunpack.c.l.bf16 %v1264
        %v1266 = vadd.f32 %v506, %v1265
        %v1267 = vld [vmem:[%s7] sm:$0x1]
        %v1268 = vld [vmem:[#allocation7] sm:$0x1]
        %v1269 = vsel %vm509, %v1266, 0.0
        %1270 = vadd.xlane.f32.xlu0 %v1269
        %v1271 = vpop.xlane.xlu0 %1270
        %v1272 = vmul.f32 %v1271, %v513
        %v1273 = vsub.f32 %v1266, %v1272
        %v1274 = vmul.f32 %v1273, %v1273
        %v1275 = vsel %vm509, %v1274, 0.0
        %1276 = vadd.xlane.f32.xlu0 %v1275
        %v1277 = vpop.xlane.xlu0 %1276
        %v1278 = vmul.f32 %v1277, %v513
        %v1279 = vadd.f32 %v1278, 1e-05
        %v1280 = vrsqrt.pop %v1279
        %v1281 = vmul.f32 %v1273, %v1280
        %v1283 = vlaneseq
        %v1284 = vshrl.u32 %v1283, 7
        %v1285 = vsub.s32 0, %v1284
        %v1286 = vrot.slane %v1267, %v1285
        %v1288 = vmul.f32 %v1281, %v1286
        %v1290 = vlaneseq
        %v1291 = vshrl.u32 %v1290, 7
        %v1292 = vsub.s32 0, %v1291
        %v1293 = vrot.slane %v1268, %v1292
        %v1295 = vadd.f32 %v1288, %v1293
        %v1296 = vpack.c.bf16 %v1295, %v1295
        %v1297 = vld [vmem:[#allocation9] sm:$0xf]
        %v1298 = vld [vmem:[#allocation9 + $0x4] sm:$0xf]
        %v1299 = vld [vmem:[#allocation9 + $0x8] sm:$0xf]
        %v1300 = vld [vmem:[#allocation9 + $0xc] sm:$0xf]
        %v1305 = vunpack.c.l.b16 %v1297
        %v1306 = vunpack.c.l.b16 %v1298
        %v1307 = vunpack.c.l.b16 %v1299
        %v1308 = vunpack.c.l.b16 %v1300
        %v1309 = vpack.c.b16 %v1306, %v1305
        %v1310 = vpack.c.b16 %v1308, %v1307
        %v1314 = vsel %vm509, %v1296, 0
        %1316 = vmatprep.subr.bf16.mxu0 0
        %1317 = vmatpush1.bf16.msra.mxu0 0
        %1318 = vmatprep.subr.bf16.mxu0 0
        %1319 = vmatpush1.bf16.msra.mxu0 0
        %1320 = vmatprep.subr.bf16.mxu0 0
        %1321 = vmatpush1.bf16.msra.mxu0 0
        %1322 = vmatprep.subr.bf16.mxu0 0
        %1323 = vmatpush1.bf16.msra.mxu0 0
        %1324 = vmatprep.subr.bf16.mxu0 0
        %1325 = vmatpush1.bf16.msra.mxu0 0
        %1326 = vmatprep.subr.bf16.mxu0 0
        %1327 = vmatpush1.bf16.msra.mxu0 0
        %1328 = vmatprep.subr.bf16.mxu0 0
        %1329 = vmatpush1.bf16.msra.mxu0 %v1310
        %1330 = vmatprep.subr.bf16.mxu0 0
        %1331 = vmatpush1.bf16.msra.mxu0 %v1309
        %1332 = vmatprep.subr.bf16.mxu0 0
        %1333 = vmatpush2.bf16.msra.mxu0 0
        %1334 = vmatprep.subr.bf16.mxu0 0
        %1335 = vmatpush2.bf16.msra.mxu0 0
        %1336 = vmatprep.subr.bf16.mxu0 0
        %1337 = vmatpush2.bf16.msra.mxu0 0
        %1338 = vmatprep.subr.bf16.mxu0 0
        %1339 = vmatpush2.bf16.msra.mxu0 0
        %1340 = vmatprep.subr.bf16.mxu0 0
        %1341 = vmatpush2.bf16.msra.mxu0 0
        %1342 = vmatprep.subr.bf16.mxu0 0
        %1343 = vmatpush2.bf16.msra.mxu0 0
        %1344 = vmatprep.subr.bf16.mxu0 0
        %1345 = vmatpush2.bf16.msra.mxu0 0
        %1346 = vmatprep.subr.bf16.mxu0 0
        %1347 = vmatpush2.bf16.msra.mxu0 0
        %1348 = vmatprep.mubr.bf16.mxu0 0
        %1349 = vmatmul.mubr.bf16.gmra.mxu0 %v1314
        %v1350 = vpop.f32.mrf.mxu0
        %v1351 = vadd.f32 0.0, %v1350
        %v1352 = vpop.f32.mrf.mxu0
        %v1353 = vpop.f32.mrf.mxu0
        %v1354 = vpop.f32.mrf.mxu0
        %1355 = vdwg.mxu0
        %v1356 = vld [vmem:[#allocation10] sm:$0xf]
        %v1357 = vld [vmem:[#allocation10 + $0x4] sm:$0xf]
        %v1358 = vld [vmem:[#allocation10 + $0x8] sm:$0xf]
        %v1359 = vld [vmem:[#allocation10 + $0xc] sm:$0xf]
        %v1364 = vunpack.c.l.b16 %v1356
        %v1365 = vunpack.c.l.b16 %v1357
        %v1366 = vunpack.c.l.b16 %v1358
        %v1367 = vunpack.c.l.b16 %v1359
        %v1368 = vpack.c.b16 %v1365, %v1364
        %v1369 = vpack.c.b16 %v1367, %v1366
        %1372 = vmatprep.subr.bf16.mxu0 0
        %1373 = vmatpush1.bf16.msra.mxu0 0
        %1374 = vmatprep.subr.bf16.mxu0 0
        %1375 = vmatpush1.bf16.msra.mxu0 0
        %1376 = vmatprep.subr.bf16.mxu0 0
        %1377 = vmatpush1.bf16.msra.mxu0 0
        %1378 = vmatprep.subr.bf16.mxu0 0
        %1379 = vmatpush1.bf16.msra.mxu0 0
        %1380 = vmatprep.subr.bf16.mxu0 0
        %1381 = vmatpush1.bf16.msra.mxu0 0
        %1382 = vmatprep.subr.bf16.mxu0 0
        %1383 = vmatpush1.bf16.msra.mxu0 0
        %1384 = vmatprep.subr.bf16.mxu0 0
        %1385 = vmatpush1.bf16.msra.mxu0 %v1369
        %1386 = vmatprep.subr.bf16.mxu0 0
        %1387 = vmatpush1.bf16.msra.mxu0 %v1368
        %1388 = vmatprep.subr.bf16.mxu0 0
        %1389 = vmatpush2.bf16.msra.mxu0 0
        %1390 = vmatprep.subr.bf16.mxu0 0
        %1391 = vmatpush2.bf16.msra.mxu0 0
        %1392 = vmatprep.subr.bf16.mxu0 0
        %1393 = vmatpush2.bf16.msra.mxu0 0
        %1394 = vmatprep.subr.bf16.mxu0 0
        %1395 = vmatpush2.bf16.msra.mxu0 0
        %1396 = vmatprep.subr.bf16.mxu0 0
        %1397 = vmatpush2.bf16.msra.mxu0 0
        %1398 = vmatprep.subr.bf16.mxu0 0
        %1399 = vmatpush2.bf16.msra.mxu0 0
        %1400 = vmatprep.subr.bf16.mxu0 0
        %1401 = vmatpush2.bf16.msra.mxu0 0
        %1402 = vmatprep.subr.bf16.mxu0 0
        %1403 = vmatpush2.bf16.msra.mxu0 0
        %1404 = vmatprep.mubr.bf16.mxu0 0
        %1405 = vmatmul.mubr.bf16.gmra.mxu0 %v1314
        %v1406 = vpop.f32.mrf.mxu0
        %v1407 = vadd.f32 0.0, %v1406
        %v1408 = vpop.f32.mrf.mxu0
        %v1409 = vpop.f32.mrf.mxu0
        %v1410 = vpop.f32.mrf.mxu0
        %1411 = vdwg.mxu0
        %v1412 = vpack.c.bf16 %v1407, %v1407
        %v1413 = vmul.f32 %v1351, 0.5
        %v1414 = vmul.f32 %v1351, 0.044715
        %v1415 = vmul.f32 %v1414, %v1351
        %v1416 = vmul.f32 %v1415, %v1351
        %v1417 = vadd.f32 %v1351, %v1416
        %v1418 = vmul.f32 %v1417, 0.7978846
        %v1419 = vtanh.pop %v1418
        %v1420 = vadd.f32 %v1419, 1.0
        %v1421 = vmul.f32 %v1413, %v1420
        %v1422 = vpack.c.bf16 %v1421, %v1421
        %v1423 = vmul.bf16 %v1422, %v1412
        %v1424 = vld [vmem:[%s11] sm:$0xf]
        %v1425 = vld [vmem:[%s11 + $0x4] sm:$0xf]
        %v1426 = vld [vmem:[%s11 + $0x8] sm:$0xf]
        %v1427 = vld [vmem:[%s11 + $0xc] sm:$0xf]
        %v1428 = vld [vmem:[%s11 + $0x10] sm:$0xf]
        %v1429 = vld [vmem:[%s11 + $0x14] sm:$0xf]
        %v1430 = vld [vmem:[%s11 + $0x18] sm:$0xf]
        %v1431 = vld [vmem:[%s11 + $0x1c] sm:$0xf]
        %v1440 = vunpack.c.l.b16 %v1424
        %v1441 = vunpack.c.l.b16 %v1425
        %v1442 = vunpack.c.l.b16 %v1426
        %v1443 = vunpack.c.l.b16 %v1427
        %v1444 = vunpack.c.l.b16 %v1428
        %v1445 = vunpack.c.l.b16 %v1429
        %v1446 = vunpack.c.l.b16 %v1430
        %v1447 = vunpack.c.l.b16 %v1431
        %v1448 = vpack.c.b16 %v1441, %v1440
        %v1449 = vpack.c.b16 %v1443, %v1442
        %v1450 = vpack.c.b16 %v1445, %v1444
        %v1451 = vpack.c.b16 %v1447, %v1446
        %vm1456 = vcmask 523264
        %v1458 = vsel %vm1456, %v1423, 0
        %1460 = vmatprep.subr.bf16.mxu0 0
        %1461 = vmatpush1.bf16.msra.mxu0 0
        %1462 = vmatprep.subr.bf16.mxu0 0
        %1463 = vmatpush1.bf16.msra.mxu0 0
        %1464 = vmatprep.subr.bf16.mxu0 0
        %1465 = vmatpush1.bf16.msra.mxu0 0
        %1466 = vmatprep.subr.bf16.mxu0 0
        %1467 = vmatpush1.bf16.msra.mxu0 0
        %1468 = vmatprep.subr.bf16.mxu0 0
        %1469 = vmatpush1.bf16.msra.mxu0 %v1451
        %1470 = vmatprep.subr.bf16.mxu0 0
        %1471 = vmatpush1.bf16.msra.mxu0 %v1450
        %1472 = vmatprep.subr.bf16.mxu0 0
        %1473 = vmatpush1.bf16.msra.mxu0 %v1449
        %1474 = vmatprep.subr.bf16.mxu0 0
        %1475 = vmatpush1.bf16.msra.mxu0 %v1448
        %1476 = vmatprep.subr.bf16.mxu0 0
        %1477 = vmatpush2.bf16.msra.mxu0 0
        %1478 = vmatprep.subr.bf16.mxu0 0
        %1479 = vmatpush2.bf16.msra.mxu0 0
        %1480 = vmatprep.subr.bf16.mxu0 0
        %1481 = vmatpush2.bf16.msra.mxu0 0
        %1482 = vmatprep.subr.bf16.mxu0 0
        %1483 = vmatpush2.bf16.msra.mxu0 0
        %1484 = vmatprep.subr.bf16.mxu0 0
        %1485 = vmatpush2.bf16.msra.mxu0 0
        %1486 = vmatprep.subr.bf16.mxu0 0
        %1487 = vmatpush2.bf16.msra.mxu0 0
        %1488 = vmatprep.subr.bf16.mxu0 0
        %1489 = vmatpush2.bf16.msra.mxu0 0
        %1490 = vmatprep.subr.bf16.mxu0 0
        %1491 = vmatpush2.bf16.msra.mxu0 0
        %1492 = vmatprep.mubr.bf16.mxu0 0
        %1493 = vmatmul.mubr.bf16.gmra.mxu0 %v1458
        %v1494 = vpop.f32.mrf.mxu0
        %v1495 = vadd.f32 0.0, %v1494
        %v1496 = vpop.f32.mrf.mxu0
        %v1497 = vpop.f32.mrf.mxu0
        %v1498 = vpop.f32.mrf.mxu0
        %1499 = vdwg.mxu0
        %v1500 = vpack.c.bf16 %v1495, %v1495
        %v1501 = vunpack.c.l.bf16 %v1500
        %v1502 = vadd.f32 %v1266, %v1501
        %1503 = vst.msk [vmem:[%s488] sm:$0xff] %vm509, %v1502
        %s1504 = sand.u32 %s300, 1
        %s1505 = scalar_lea.sflag [#allocation4], %s1504
        %s1506 = sand.u32 %s300, 1
        %s1507 = smul.addr %s1506, 8
        %s1508 = scalar_lea.vmem [#allocation12], %s1507
        // Predicated region
        $region89: #{tpu_custom_call.1} parent=67 // pred_check
          %p1509 = pneg %p310
        $region90: #{tpu_custom_call.1} parent=67 // pred_check_branch
          %1511 = sbr.rel (%p1509) target = $region92
        $region91: #{tpu_custom_call.1} parent=67 // pred_region
          %s1513 = ssub.s32 128, 128
          %1514 = vsyncadd %s1505, %s1513
          %s1515 = smul.addr %s30, 128
          %s1516 = scalar_lea.hbm %s12, %s1515
          %s1518 = sshll.u32 %s1508, 4
          %s1519 = int_to_ptr.vmem [resolvable:$true] %s1518
          %1521 = dma.vmem_to_hbm [thread:$0]  %s1519, 128, %s1516, %s1505
        $region92: #{tpu_custom_call.1} parent=67 // pred_fallthru
          _
      $region68: #{tpu_custom_call.1} parent=5 // pred_fallthru
        _
      %p1522 = scmp.le.s32.totalorder 2, %s25
      // Predicated region
      $region93: #{tpu_custom_call.1} parent=5 // pred_check
        %p1523 = pneg %p1522
      $region94: #{tpu_custom_call.1} parent=5 // pred_check_branch
        %1525 = sbr.rel (%p1523) target = $region96
      $region95: #{tpu_custom_call.1} parent=5 // pred_region
        %s1526 = ssub.s32 %s25, 2
        // Predicated region
        $region97: #{tpu_custom_call.1} parent=95 // pred_check
          %p1527 = pneg %p316
        $region98: #{tpu_custom_call.1} parent=95 // pred_check_branch
          %1529 = sbr.rel (%p1527) target = $region100
        $region99: #{tpu_custom_call.1} parent=95 // pred_region
          %s1530 = sand.u32 %s301, 1
          %s1531 = scalar_lea.sflag [#allocation4], %s1530
          %s1532 = sand.u32 %s301, 1
          %s1533 = smul.addr %s1532, 8
          %s1534 = scalar_lea.vmem [#allocation12], %s1533
          %1535 = dma.done %s1531, 128
        $region100: #{tpu_custom_call.1} parent=95 // pred_fallthru
          _
      $region96: #{tpu_custom_call.1} parent=5 // pred_fallthru
        _
    $region6: #{tpu_custom_call.1} parent=1 // loop_footer
      %s29 = sadd.s32 1, %s25
    $region7: #{tpu_custom_call.1} parent=1 // loop_footer_branch
      %24 = sbr.rel target = $region3
    $region8: #{tpu_custom_call.1} parent=1 // loop_exit
      _
    %1536 = vsyncpa [#allocation3], 1
    %s1537 = scalar_lea.sflag [#allocation3], 1
    %1538 = vsyncpa %s1537, 1
    %1539 = vsyncpa [#allocation8], 1
    %1540 = vsyncpa [#allocation11], 1
    %1541 = vsyncpa [#allocation4], 1
    %s1542 = scalar_lea.sflag [#allocation4], 1
    %1543 = vsyncpa %s1542, 1
    %1544 = vsyncpa [#allocation5], 1
    %s1545 = scalar_lea.sflag [#allocation5], 1
    %1546 = vsyncpa %s1545, 1

</llo_original>
